<compile_context>
chip_gen: v7x
topology: tpu7x:2x2x1
jax: 0.10.0
libtpu: 0.0.40
codegen_flags: <defaults>
</compile_context>

<pallas_src>
import jax
import jax.numpy as jnp
from jax import lax
from jax.experimental import pallas as pl
from jax.experimental.pallas import tpu as pltpu
import numpy as np

# ----------------------------- hyperparameters ------------------------------
EMBEDDING_DIM = 16
HIDDEN_NUM = 32
NUM_LAYER = 1
BIDIRECTIONAL = True
VOCAB_SIZE = 27          # len(Letter_dict) + 1, padding_idx = 0
NUM_CLASSES = 2
MLP_HIDDEN = 16
SUBLANE = 8


# ------------------------------- Pallas kernel ------------------------------
def bilstm_head_kernel(gates_ref, mask_ref, whh_ref,
                       w1_ref, b1_ref, w2_ref, b2_ref, out_ref):
    """Fused bidirectional LSTM recurrence + 2-layer MLP head.

    gates_ref : (T, B, 8H) f32 precomputed input projections (embedding gather,
                W_ih matmul and both biases folded in; columns ordered
                [i_f,i_b | f_f,f_b | o_f,o_b | g_f,g_b], g columns pre-scaled
                x2; the backward half already uses time-reversed tokens so
                loop index i corresponds to t = T-1-i for that direction).
    mask_ref  : (T, B, 2H) f32 validity mask ([fwd | bwd], lane-replicated).
    whh_ref   : (2H, 8H) bf16 block-diagonal recurrent weight, same column
                order (rows 0:H act on h_f, rows H:2H on h_b), g columns x2.
    """
    T, B, G = gates_ref.shape
    H2 = G // 4                          # 2H: concatenated fwd|bwd state width

    whh = whh_ref[...]                   # (2H, 8H) bf16, loaded once

    def step(i, carry):
        h_cat, c_cat = carry             # (B, 2H) f32 each

        # One fused recurrent MXU pass for both directions (bf16 operands,
        # f32 accumulate). Keeping the add fused here lets Mosaic put it in
        # the matmul epilogue (in-place MRB accumulate on v7x).
        g = gates_ref[i] + jnp.dot(h_cat.astype(jnp.bfloat16), whh,
                                   preferred_element_type=jnp.float32)  # (B,8H)

        # Single contiguous sigmoid over all 8H lanes (exactly 2 vregs);
        # tanh recovered via the pre-scaled-by-2 g columns: tanh(x)=2*sig(2x)-1.
        s = jax.nn.sigmoid(g)
        i_g = s[:, 0 * H2:1 * H2]
        f_g = s[:, 1 * H2:2 * H2]
        o_g = s[:, 2 * H2:3 * H2]
        g_g = 2.0 * s[:, 3 * H2:4 * H2] - 1.0

        c_new = f_g * c_cat + i_g * g_g
        h_new = o_g * jnp.tanh(c_new)    # one tanh over 2H lanes

        # Packed-sequence masking: freeze state where the step is past length.
        m = mask_ref[i] != 0.0           # (B, 2H)
        return jnp.where(m, h_new, h_cat), jnp.where(m, c_new, c_cat)

    z = jnp.zeros((B, H2), jnp.float32)
    # T is small (8): full unroll gives the scheduler visibility.
    h_cat, _ = lax.fori_loop(0, T, step, (z, z), unroll=True)

    # h_n.transpose(0,1).reshape(B, 2H) == [h_fwd | h_bwd] per row == h_cat.
    hidden = jnp.maximum(
        jnp.dot(h_cat, w1_ref[...], preferred_element_type=jnp.float32)
        + b1_ref[...], 0.0)
    out = (jnp.dot(hidden, w2_ref[...], preferred_element_type=jnp.float32)
           + b2_ref[...])
    out_ref[...] = out.astype(out_ref.dtype)


# -------------------- parameter-only fusion (run ONCE) ----------------------
def prepare_fused_params(params):
    """Hoisted parameter transforms. Call once at parameter-load time.

    Produces:
      table_f / table_b : (VOCAB, 8H) f32 -- embedding rows pre-multiplied by
          W_ih with b_ih+b_hh folded in, scattered into the fused gate column
          order [i_f,i_b | f_f,f_b | o_f,o_b | g_f,g_b] (each table fills only
          its direction's columns, zeros elsewhere; g columns pre-scaled x2).
      whh : (2H, 8H) bf16 block-diagonal recurrent weight, same column order,
          g columns pre-scaled x2.
    """
    H = HIDDEN_NUM
    # (VOCAB, 4H) per-direction tables in PyTorch gate order [i, f, g, o].
    t_f = params["embedding"] @ params["wih_f"] + params["b_f"]
    t_b = params["embedding"] @ params["wih_b"] + params["b_b"]
    V = t_f.shape[0]

    table_f = jnp.zeros((V, 8 * H), jnp.float32)
    table_f = table_f.at[:, 0 * H:1 * H].set(t_f[:, 0 * H:1 * H])          # i_f
    table_f = table_f.at[:, 2 * H:3 * H].set(t_f[:, 1 * H:2 * H])          # f_f
    table_f = table_f.at[:, 4 * H:5 * H].set(t_f[:, 3 * H:4 * H])          # o_f
    table_f = table_f.at[:, 6 * H:7 * H].set(2.0 * t_f[:, 2 * H:3 * H])    # g_f x2

    table_b = jnp.zeros((V, 8 * H), jnp.float32)
    table_b = table_b.at[:, 1 * H:2 * H].set(t_b[:, 0 * H:1 * H])          # i_b
    table_b = table_b.at[:, 3 * H:4 * H].set(t_b[:, 1 * H:2 * H])          # f_b
    table_b = table_b.at[:, 5 * H:6 * H].set(t_b[:, 3 * H:4 * H])          # o_b
    table_b = table_b.at[:, 7 * H:8 * H].set(2.0 * t_b[:, 2 * H:3 * H])    # g_b x2

    whh_f, whh_b = params["whh_f"], params["whh_b"]
    whh = jnp.zeros((2 * H, 8 * H), jnp.float32)
    whh = whh.at[:H, 0 * H:1 * H].set(whh_f[:, 0 * H:1 * H])               # i_f
    whh = whh.at[H:, 1 * H:2 * H].set(whh_b[:, 0 * H:1 * H])               # i_b
    whh = whh.at[:H, 2 * H:3 * H].set(whh_f[:, 1 * H:2 * H])               # f_f
    whh = whh.at[H:, 3 * H:4 * H].set(whh_b[:, 1 * H:2 * H])               # f_b
    whh = whh.at[:H, 4 * H:5 * H].set(whh_f[:, 3 * H:4 * H])               # o_f
    whh = whh.at[H:, 5 * H:6 * H].set(whh_b[:, 3 * H:4 * H])               # o_b
    whh = whh.at[:H, 6 * H:7 * H].set(2.0 * whh_f[:, 2 * H:3 * H])         # g_f x2
    whh = whh.at[H:, 7 * H:8 * H].set(2.0 * whh_b[:, 2 * H:3 * H])         # g_b x2

    return {
        "table_f": table_f,
        "table_b": table_b,
        "whh": whh.astype(jnp.bfloat16),       # bf16 MXU operand
        "w1": params["w1"], "b1": params["b1"],
        "w2": params["w2"], "b2": params["b2"],
    }


# --------------------------------- wrapper ----------------------------------
def net_forward(tokens, lengths, fused):
    B, T = tokens.shape
    H = HIDDEN_NUM

    # Pad batch to a sublane multiple (8) so every (B, .) op is full-sublane.
    # Padded rows get length 0 -> fully masked -> sliced off at the end.
    Bp = max(SUBLANE, ((B + SUBLANE - 1) // SUBLANE) * SUBLANE)
    tokens_p = jnp.zeros((Bp, T), jnp.int32).at[:B].set(tokens.astype(jnp.int32))
    lengths_p = jnp.zeros((Bp,), jnp.int32).at[:B].set(lengths.astype(jnp.int32))

    # Embedding gather fused with the input projection; gather directly into
    # (T, B, 8H) layout (only a tiny int transpose of the tokens is needed).
    # Backward half is time-reversed so loop index i corresponds to t = T-1-i.
    tok_t = tokens_p.T                                        # (T, Bp)
    gates_all = (fused["table_f"][tok_t]
                 + fused["table_b"][tok_t[::-1]])             # (T, Bp, 8H) f32

    # Validity mask (T, Bp, 2H): [m_fwd replicated H lanes | m_bwd replicated].
    t_idx = jnp.arange(T, dtype=jnp.int32)
    m_f = (t_idx[:, None] < lengths_p[None, :]).astype(jnp.float32)
    m_b = ((T - 1 - t_idx)[:, None] < lengths_p[None, :]).astype(jnp.float32)
    mask = jnp.concatenate(
        [jnp.broadcast_to(m_f[:, :, None], (T, Bp, H)),
         jnp.broadcast_to(m_b[:, :, None], (T, Bp, H))], axis=-1)

    # Whole problem fits comfortably in VMEM at these sizes; gridless call.
    # TODO(synk): for large batches, grid over B ("parallel" so v7x shards it
    # across its 2 TensorCores) and stream the (B_tile, T, 8H) gate slab via
    # BlockSpec; size B_tile against v7x's 64 MiB VMEM (double-buffered), keep
    # B_tile <= 256 per recurrent dot on v6e/v7x and <= 128 on v5e.
    vmem = pl.BlockSpec(memory_space=pltpu.MemorySpace.VMEM)
    out_p = pl.pallas_call(
        bilstm_head_kernel,
        out_shape=jax.ShapeDtypeStruct((Bp, NUM_CLASSES), jnp.float32),
        in_specs=[vmem] * 7,
        out_specs=vmem,
    )(gates_all, mask, fused["whh"],
      fused["w1"], fused["b1"], fused["w2"], fused["b2"])
    return out_p[:B]


# -------------------------- pure-JAX reference ------------------------------
def net_forward_ref(tokens, lengths, params):
    emb = params["embedding"][tokens].astype(jnp.float32)
    B, T, E = emb.shape
    H = HIDDEN_NUM
    lengths = lengths.reshape(B, 1)

    def cell(x_t, h, c, wih, whh, b):
        g = x_t @ wih + h @ whh + b
        i_g = jax.nn.sigmoid(g[:, 0 * H:1 * H])
        f_g = jax.nn.sigmoid(g[:, 1 * H:2 * H])
        g_g = jnp.tanh(g[:, 2 * H:3 * H])
        o_g = jax.nn.sigmoid(g[:, 3 * H:4 * H])
        c_new = f_g * c + i_g * g_g
        return o_g * jnp.tanh(c_new), c_new

    h_f = c_f = h_b = c_b = jnp.zeros((B, H), jnp.float32)
    for i in range(T):
        t_f, t_b = i, T - 1 - i
        hf, cf = cell(emb[:, t_f], h_f, c_f,
                      params["wih_f"], params["whh_f"], params["b_f"])
        hb, cb = cell(emb[:, t_b], h_b, c_b,
                      params["wih_b"], params["whh_b"], params["b_b"])
        m_f, m_b = t_f < lengths, t_b < lengths
        h_f, c_f = jnp.where(m_f, hf, h_f), jnp.where(m_f, cf, c_f)
        h_b, c_b = jnp.where(m_b, hb, h_b), jnp.where(m_b, cb, c_b)

    h_n = jnp.concatenate([h_f, h_b], axis=-1)
    hidden = jnp.maximum(h_n @ params["w1"] + params["b1"], 0.0)
    return hidden @ params["w2"] + params["b2"]


# ----------------------------- parameter init -------------------------------
def init_params(key):
    H, E = HIDDEN_NUM, EMBEDDING_DIM
    ks = jax.random.split(key, 12)
    s = 1.0 / np.sqrt(H)

    def u(k, shape, scale):
        return jax.random.uniform(k, shape, jnp.float32, -scale, scale)

    emb = u(ks[0], (VOCAB_SIZE, E), 1.0)
    emb = emb.at[0].set(0.0)                       # padding_idx = 0

    params = {
        "embedding": emb,
        # forward direction (stored transposed: (in, 4H), gate order i,f,g,o)
        "wih_f": u(ks[1], (E, 4 * H), s),
        "whh_f": u(ks[2], (H, 4 * H), s),
        "b_f":   u(ks[3], (1, 4 * H), s) + u(ks[4], (1, 4 * H), s),  # b_ih+b_hh
        # backward direction
        "wih_b": u(ks[5], (E, 4 * H), s),
        "whh_b": u(ks[6], (H, 4 * H), s),
        "b_b":   u(ks[7], (1, 4 * H), s) + u(ks[8], (1, 4 * H), s),
        # MLP head: Linear(2H -> 16) -> ReLU -> Linear(16 -> 2)
        "w1": u(ks[9], (2 * H, MLP_HIDDEN), 1.0 / np.sqrt(2 * H)),
        "b1": u(ks[10], (1, MLP_HIDDEN), 1.0 / np.sqrt(2 * H)),
        "w2": u(ks[11], (MLP_HIDDEN, NUM_CLASSES), 1.0 / np.sqrt(MLP_HIDDEN)),
        "b2": jnp.zeros((1, NUM_CLASSES), jnp.float32),
    }
    return params


# ----------------------------------- main ------------------------------------
if __name__ == "__main__":
    B, T = 2, 8
    key = jax.random.PRNGKey(0)
    k_tok, k_par = jax.random.split(key)

    # lengths sorted descending (pack_padded_sequence enforce_sorted=True)
    lengths = jnp.array([8, 5], dtype=jnp.int32)
    tokens = jax.random.randint(k_tok, (B, T), 1, VOCAB_SIZE, dtype=jnp.int32)
    # zero out padded positions (padding_idx = 0), as a real pipeline would
    pad_mask = jnp.arange(T)[None, :] < lengths[:, None]
    tokens = jnp.where(pad_mask, tokens, 0)

    params = init_params(k_par)
    fused = prepare_fused_params(params)   # hoisted: parameter-only, run once

    fwd = jax.jit(net_forward)
    out = jax.block_until_ready(fwd(tokens, lengths, fused))

    ref = net_forward_ref(tokens, lengths, params)
    # bf16 recurrent-matmul operands + tanh-via-sigmoid identity => compare
    # against the pure-f32 reference with a correspondingly looser tolerance.
    np.testing.assert_allclose(np.asarray(out), np.asarray(ref),
                               rtol=5e-2, atol=5e-2)
    assert out.shape == (B, NUM_CLASSES)
    print("KERNEL_OK")
</pallas_src>

<mosaic_0001>
module attributes {stable_mosaic.version = 11 : i64} {
  func.func @bilstm_head_kernel(%arg0: memref<8x8x256xf32, #tpu.memory_space<vmem>>, %arg1: memref<8x8x64xf32, #tpu.memory_space<vmem>>, %arg2: memref<64x256xbf16, #tpu.memory_space<vmem>>, %arg3: memref<64x16xf32, #tpu.memory_space<vmem>>, %arg4: memref<1x16xf32, #tpu.memory_space<vmem>>, %arg5: memref<16x2xf32, #tpu.memory_space<vmem>>, %arg6: memref<1x2xf32, #tpu.memory_space<vmem>>, %arg7: memref<8x2xf32, #tpu.memory_space<vmem>>) attributes {dimension_semantics = [], scalar_prefetch = 0 : i64, scratch_operands = 0 : i64, tpu.core_type = #tpu.core_type<tc>} {
    %c0 = arith.constant 0 : index
    %c0_0 = arith.constant 0 : index
    %0 = vector.load %arg2[%c0, %c0_0] : memref<64x256xbf16, #tpu.memory_space<vmem>>, vector<64x256xbf16>
    %cst = arith.constant 0.000000e+00 : f32
    %1 = vector.broadcast %cst : f32 to vector<8x64xf32>
    %c0_i32 = arith.constant 0 : i32
    %2 = arith.index_cast %c0_i32 : i32 to index
    %c0_1 = arith.constant 0 : index
    %c0_2 = arith.constant 0 : index
    %3 = vector.load %arg0[%2, %c0_1, %c0_2] : memref<8x8x256xf32, #tpu.memory_space<vmem>>, vector<1x8x256xf32>
    %4 = vector.shape_cast %3 : vector<1x8x256xf32> to vector<8x256xf32>
    %5 = arith.truncf %1 : vector<8x64xf32> to vector<8x64xbf16>
    %cst_3 = arith.constant dense<0.000000e+00> : vector<8x256xf32>
    %6 = tpu.matmul %5, %0, %cst_3 {dimension_numbers = #tpu.dot_dimension_numbers<[1], [0], [0], [1], [0, 0, 1, 1], [], []>} : vector<8x64xbf16>, vector<64x256xbf16>, vector<8x256xf32> -> vector<8x256xf32>
    %7 = arith.addf %4, %6 : vector<8x256xf32>
    %8 = arith.negf %7 : vector<8x256xf32>
    %9 = math.exp %8 : vector<8x256xf32>
    %cst_4 = arith.constant 1.000000e+00 : f32
    %10 = vector.broadcast %cst_4 : f32 to vector<8x256xf32>
    %11 = arith.addf %10, %9 : vector<8x256xf32>
    %12 = arith.divf %10, %11 : vector<8x256xf32>
    %13 = vector.extract_strided_slice %12 {offsets = [0, 0], sizes = [8, 64], strides = [1, 1]} : vector<8x256xf32> to vector<8x64xf32>
    %14 = vector.extract_strided_slice %12 {offsets = [0, 64], sizes = [8, 64], strides = [1, 1]} : vector<8x256xf32> to vector<8x64xf32>
    %15 = vector.extract_strided_slice %12 {offsets = [0, 128], sizes = [8, 64], strides = [1, 1]} : vector<8x256xf32> to vector<8x64xf32>
    %16 = vector.extract_strided_slice %12 {offsets = [0, 192], sizes = [8, 64], strides = [1, 1]} : vector<8x256xf32> to vector<8x64xf32>
    %cst_5 = arith.constant 2.000000e+00 : f32
    %17 = vector.broadcast %cst_5 : f32 to vector<8x64xf32>
    %18 = arith.mulf %17, %16 : vector<8x64xf32>
    %cst_6 = arith.constant 1.000000e+00 : f32
    %19 = vector.broadcast %cst_6 : f32 to vector<8x64xf32>
    %20 = arith.subf %18, %19 : vector<8x64xf32>
    %21 = arith.mulf %14, %1 : vector<8x64xf32>
    %22 = arith.mulf %13, %20 : vector<8x64xf32>
    %23 = arith.addf %21, %22 : vector<8x64xf32>
    %24 = math.tanh %23 : vector<8x64xf32>
    %25 = arith.mulf %15, %24 : vector<8x64xf32>
    %26 = arith.index_cast %c0_i32 : i32 to index
    %c0_7 = arith.constant 0 : index
    %c0_8 = arith.constant 0 : index
    %27 = vector.load %arg1[%26, %c0_7, %c0_8] : memref<8x8x64xf32, #tpu.memory_space<vmem>>, vector<1x8x64xf32>
    %28 = vector.shape_cast %27 : vector<1x8x64xf32> to vector<8x64xf32>
    %cst_9 = arith.constant 0.000000e+00 : f32
    %29 = vector.broadcast %cst_9 : f32 to vector<8x64xf32>
    %30 = arith.cmpf one, %28, %29 : vector<8x64xf32>
    %31 = arith.select %30, %25, %1 : vector<8x64xi1>, vector<8x64xf32>
    %32 = arith.select %30, %23, %1 : vector<8x64xi1>, vector<8x64xf32>
    %c1_i32 = arith.constant 1 : i32
    %33 = arith.index_cast %c1_i32 : i32 to index
    %c0_10 = arith.constant 0 : index
    %c0_11 = arith.constant 0 : index
    %34 = vector.load %arg0[%33, %c0_10, %c0_11] : memref<8x8x256xf32, #tpu.memory_space<vmem>>, vector<1x8x256xf32>
    %35 = vector.shape_cast %34 : vector<1x8x256xf32> to vector<8x256xf32>
    %36 = arith.truncf %31 : vector<8x64xf32> to vector<8x64xbf16>
    %cst_12 = arith.constant dense<0.000000e+00> : vector<8x256xf32>
    %37 = tpu.matmul %36, %0, %cst_12 {dimension_numbers = #tpu.dot_dimension_numbers<[1], [0], [0], [1], [0, 0, 1, 1], [], []>} : vector<8x64xbf16>, vector<64x256xbf16>, vector<8x256xf32> -> vector<8x256xf32>
    %38 = arith.addf %35, %37 : vector<8x256xf32>
    %39 = arith.negf %38 : vector<8x256xf32>
    %40 = math.exp %39 : vector<8x256xf32>
    %cst_13 = arith.constant 1.000000e+00 : f32
    %41 = vector.broadcast %cst_13 : f32 to vector<8x256xf32>
    %42 = arith.addf %41, %40 : vector<8x256xf32>
    %43 = arith.divf %41, %42 : vector<8x256xf32>
    %44 = vector.extract_strided_slice %43 {offsets = [0, 0], sizes = [8, 64], strides = [1, 1]} : vector<8x256xf32> to vector<8x64xf32>
    %45 = vector.extract_strided_slice %43 {offsets = [0, 64], sizes = [8, 64], strides = [1, 1]} : vector<8x256xf32> to vector<8x64xf32>
    %46 = vector.extract_strided_slice %43 {offsets = [0, 128], sizes = [8, 64], strides = [1, 1]} : vector<8x256xf32> to vector<8x64xf32>
    %47 = vector.extract_strided_slice %43 {offsets = [0, 192], sizes = [8, 64], strides = [1, 1]} : vector<8x256xf32> to vector<8x64xf32>
    %cst_14 = arith.constant 2.000000e+00 : f32
    %48 = vector.broadcast %cst_14 : f32 to vector<8x64xf32>
    %49 = arith.mulf %48, %47 : vector<8x64xf32>
    %cst_15 = arith.constant 1.000000e+00 : f32
    %50 = vector.broadcast %cst_15 : f32 to vector<8x64xf32>
    %51 = arith.subf %49, %50 : vector<8x64xf32>
    %52 = arith.mulf %45, %32 : vector<8x64xf32>
    %53 = arith.mulf %44, %51 : vector<8x64xf32>
    %54 = arith.addf %52, %53 : vector<8x64xf32>
    %55 = math.tanh %54 : vector<8x64xf32>
    %56 = arith.mulf %46, %55 : vector<8x64xf32>
    %57 = arith.index_cast %c1_i32 : i32 to index
    %c0_16 = arith.constant 0 : index
    %c0_17 = arith.constant 0 : index
    %58 = vector.load %arg1[%57, %c0_16, %c0_17] : memref<8x8x64xf32, #tpu.memory_space<vmem>>, vector<1x8x64xf32>
    %59 = vector.shape_cast %58 : vector<1x8x64xf32> to vector<8x64xf32>
    %cst_18 = arith.constant 0.000000e+00 : f32
    %60 = vector.broadcast %cst_18 : f32 to vector<8x64xf32>
    %61 = arith.cmpf one, %59, %60 : vector<8x64xf32>
    %62 = arith.select %61, %56, %31 : vector<8x64xi1>, vector<8x64xf32>
    %63 = arith.select %61, %54, %32 : vector<8x64xi1>, vector<8x64xf32>
    %c2_i32 = arith.constant 2 : i32
    %64 = arith.index_cast %c2_i32 : i32 to index
    %c0_19 = arith.constant 0 : index
    %c0_20 = arith.constant 0 : index
    %65 = vector.load %arg0[%64, %c0_19, %c0_20] : memref<8x8x256xf32, #tpu.memory_space<vmem>>, vector<1x8x256xf32>
    %66 = vector.shape_cast %65 : vector<1x8x256xf32> to vector<8x256xf32>
    %67 = arith.truncf %62 : vector<8x64xf32> to vector<8x64xbf16>
    %cst_21 = arith.constant dense<0.000000e+00> : vector<8x256xf32>
    %68 = tpu.matmul %67, %0, %cst_21 {dimension_numbers = #tpu.dot_dimension_numbers<[1], [0], [0], [1], [0, 0, 1, 1], [], []>} : vector<8x64xbf16>, vector<64x256xbf16>, vector<8x256xf32> -> vector<8x256xf32>
    %69 = arith.addf %66, %68 : vector<8x256xf32>
    %70 = arith.negf %69 : vector<8x256xf32>
    %71 = math.exp %70 : vector<8x256xf32>
    %cst_22 = arith.constant 1.000000e+00 : f32
    %72 = vector.broadcast %cst_22 : f32 to vector<8x256xf32>
    %73 = arith.addf %72, %71 : vector<8x256xf32>
    %74 = arith.divf %72, %73 : vector<8x256xf32>
    %75 = vector.extract_strided_slice %74 {offsets = [0, 0], sizes = [8, 64], strides = [1, 1]} : vector<8x256xf32> to vector<8x64xf32>
    %76 = vector.extract_strided_slice %74 {offsets = [0, 64], sizes = [8, 64], strides = [1, 1]} : vector<8x256xf32> to vector<8x64xf32>
    %77 = vector.extract_strided_slice %74 {offsets = [0, 128], sizes = [8, 64], strides = [1, 1]} : vector<8x256xf32> to vector<8x64xf32>
    %78 = vector.extract_strided_slice %74 {offsets = [0, 192], sizes = [8, 64], strides = [1, 1]} : vector<8x256xf32> to vector<8x64xf32>
    %cst_23 = arith.constant 2.000000e+00 : f32
    %79 = vector.broadcast %cst_23 : f32 to vector<8x64xf32>
    %80 = arith.mulf %79, %78 : vector<8x64xf32>
    %cst_24 = arith.constant 1.000000e+00 : f32
    %81 = vector.broadcast %cst_24 : f32 to vector<8x64xf32>
    %82 = arith.subf %80, %81 : vector<8x64xf32>
    %83 = arith.mulf %76, %63 : vector<8x64xf32>
    %84 = arith.mulf %75, %82 : vector<8x64xf32>
    %85 = arith.addf %83, %84 : vector<8x64xf32>
    %86 = math.tanh %85 : vector<8x64xf32>
    %87 = arith.mulf %77, %86 : vector<8x64xf32>
    %88 = arith.index_cast %c2_i32 : i32 to index
    %c0_25 = arith.constant 0 : index
    %c0_26 = arith.constant 0 : index
    %89 = vector.load %arg1[%88, %c0_25, %c0_26] : memref<8x8x64xf32, #tpu.memory_space<vmem>>, vector<1x8x64xf32>
    %90 = vector.shape_cast %89 : vector<1x8x64xf32> to vector<8x64xf32>
    %cst_27 = arith.constant 0.000000e+00 : f32
    %91 = vector.broadcast %cst_27 : f32 to vector<8x64xf32>
    %92 = arith.cmpf one, %90, %91 : vector<8x64xf32>
    %93 = arith.select %92, %87, %62 : vector<8x64xi1>, vector<8x64xf32>
    %94 = arith.select %92, %85, %63 : vector<8x64xi1>, vector<8x64xf32>
    %c3_i32 = arith.constant 3 : i32
    %95 = arith.index_cast %c3_i32 : i32 to index
    %c0_28 = arith.constant 0 : index
    %c0_29 = arith.constant 0 : index
    %96 = vector.load %arg0[%95, %c0_28, %c0_29] : memref<8x8x256xf32, #tpu.memory_space<vmem>>, vector<1x8x256xf32>
    %97 = vector.shape_cast %96 : vector<1x8x256xf32> to vector<8x256xf32>
    %98 = arith.truncf %93 : vector<8x64xf32> to vector<8x64xbf16>
    %cst_30 = arith.constant dense<0.000000e+00> : vector<8x256xf32>
    %99 = tpu.matmul %98, %0, %cst_30 {dimension_numbers = #tpu.dot_dimension_numbers<[1], [0], [0], [1], [0, 0, 1, 1], [], []>} : vector<8x64xbf16>, vector<64x256xbf16>, vector<8x256xf32> -> vector<8x256xf32>
    %100 = arith.addf %97, %99 : vector<8x256xf32>
    %101 = arith.negf %100 : vector<8x256xf32>
    %102 = math.exp %101 : vector<8x256xf32>
    %cst_31 = arith.constant 1.000000e+00 : f32
    %103 = vector.broadcast %cst_31 : f32 to vector<8x256xf32>
    %104 = arith.addf %103, %102 : vector<8x256xf32>
    %105 = arith.divf %103, %104 : vector<8x256xf32>
    %106 = vector.extract_strided_slice %105 {offsets = [0, 0], sizes = [8, 64], strides = [1, 1]} : vector<8x256xf32> to vector<8x64xf32>
    %107 = vector.extract_strided_slice %105 {offsets = [0, 64], sizes = [8, 64], strides = [1, 1]} : vector<8x256xf32> to vector<8x64xf32>
    %108 = vector.extract_strided_slice %105 {offsets = [0, 128], sizes = [8, 64], strides = [1, 1]} : vector<8x256xf32> to vector<8x64xf32>
    %109 = vector.extract_strided_slice %105 {offsets = [0, 192], sizes = [8, 64], strides = [1, 1]} : vector<8x256xf32> to vector<8x64xf32>
    %cst_32 = arith.constant 2.000000e+00 : f32
    %110 = vector.broadcast %cst_32 : f32 to vector<8x64xf32>
    %111 = arith.mulf %110, %109 : vector<8x64xf32>
    %cst_33 = arith.constant 1.000000e+00 : f32
    %112 = vector.broadcast %cst_33 : f32 to vector<8x64xf32>
    %113 = arith.subf %111, %112 : vector<8x64xf32>
    %114 = arith.mulf %107, %94 : vector<8x64xf32>
    %115 = arith.mulf %106, %113 : vector<8x64xf32>
    %116 = arith.addf %114, %115 : vector<8x64xf32>
    %117 = math.tanh %116 : vector<8x64xf32>
    %118 = arith.mulf %108, %117 : vector<8x64xf32>
    %119 = arith.index_cast %c3_i32 : i32 to index
    %c0_34 = arith.constant 0 : index
    %c0_35 = arith.constant 0 : index
    %120 = vector.load %arg1[%119, %c0_34, %c0_35] : memref<8x8x64xf32, #tpu.memory_space<vmem>>, vector<1x8x64xf32>
    %121 = vector.shape_cast %120 : vector<1x8x64xf32> to vector<8x64xf32>
    %cst_36 = arith.constant 0.000000e+00 : f32
    %122 = vector.broadcast %cst_36 : f32 to vector<8x64xf32>
    %123 = arith.cmpf one, %121, %122 : vector<8x64xf32>
    %124 = arith.select %123, %118, %93 : vector<8x64xi1>, vector<8x64xf32>
    %125 = arith.select %123, %116, %94 : vector<8x64xi1>, vector<8x64xf32>
    %c4_i32 = arith.constant 4 : i32
    %126 = arith.index_cast %c4_i32 : i32 to index
    %c0_37 = arith.constant 0 : index
    %c0_38 = arith.constant 0 : index
    %127 = vector.load %arg0[%126, %c0_37, %c0_38] : memref<8x8x256xf32, #tpu.memory_space<vmem>>, vector<1x8x256xf32>
    %128 = vector.shape_cast %127 : vector<1x8x256xf32> to vector<8x256xf32>
    %129 = arith.truncf %124 : vector<8x64xf32> to vector<8x64xbf16>
    %cst_39 = arith.constant dense<0.000000e+00> : vector<8x256xf32>
    %130 = tpu.matmul %129, %0, %cst_39 {dimension_numbers = #tpu.dot_dimension_numbers<[1], [0], [0], [1], [0, 0, 1, 1], [], []>} : vector<8x64xbf16>, vector<64x256xbf16>, vector<8x256xf32> -> vector<8x256xf32>
    %131 = arith.addf %128, %130 : vector<8x256xf32>
    %132 = arith.negf %131 : vector<8x256xf32>
    %133 = math.exp %132 : vector<8x256xf32>
    %cst_40 = arith.constant 1.000000e+00 : f32
    %134 = vector.broadcast %cst_40 : f32 to vector<8x256xf32>
    %135 = arith.addf %134, %133 : vector<8x256xf32>
    %136 = arith.divf %134, %135 : vector<8x256xf32>
    %137 = vector.extract_strided_slice %136 {offsets = [0, 0], sizes = [8, 64], strides = [1, 1]} : vector<8x256xf32> to vector<8x64xf32>
    %138 = vector.extract_strided_slice %136 {offsets = [0, 64], sizes = [8, 64], strides = [1, 1]} : vector<8x256xf32> to vector<8x64xf32>
    %139 = vector.extract_strided_slice %136 {offsets = [0, 128], sizes = [8, 64], strides = [1, 1]} : vector<8x256xf32> to vector<8x64xf32>
    %140 = vector.extract_strided_slice %136 {offsets = [0, 192], sizes = [8, 64], strides = [1, 1]} : vector<8x256xf32> to vector<8x64xf32>
    %cst_41 = arith.constant 2.000000e+00 : f32
    %141 = vector.broadcast %cst_41 : f32 to vector<8x64xf32>
    %142 = arith.mulf %141, %140 : vector<8x64xf32>
    %cst_42 = arith.constant 1.000000e+00 : f32
    %143 = vector.broadcast %cst_42 : f32 to vector<8x64xf32>
    %144 = arith.subf %142, %143 : vector<8x64xf32>
    %145 = arith.mulf %138, %125 : vector<8x64xf32>
    %146 = arith.mulf %137, %144 : vector<8x64xf32>
    %147 = arith.addf %145, %146 : vector<8x64xf32>
    %148 = math.tanh %147 : vector<8x64xf32>
    %149 = arith.mulf %139, %148 : vector<8x64xf32>
    %150 = arith.index_cast %c4_i32 : i32 to index
    %c0_43 = arith.constant 0 : index
    %c0_44 = arith.constant 0 : index
    %151 = vector.load %arg1[%150, %c0_43, %c0_44] : memref<8x8x64xf32, #tpu.memory_space<vmem>>, vector<1x8x64xf32>
    %152 = vector.shape_cast %151 : vector<1x8x64xf32> to vector<8x64xf32>
    %cst_45 = arith.constant 0.000000e+00 : f32
    %153 = vector.broadcast %cst_45 : f32 to vector<8x64xf32>
    %154 = arith.cmpf one, %152, %153 : vector<8x64xf32>
    %155 = arith.select %154, %149, %124 : vector<8x64xi1>, vector<8x64xf32>
    %156 = arith.select %154, %147, %125 : vector<8x64xi1>, vector<8x64xf32>
    %c5_i32 = arith.constant 5 : i32
    %157 = arith.index_cast %c5_i32 : i32 to index
    %c0_46 = arith.constant 0 : index
    %c0_47 = arith.constant 0 : index
    %158 = vector.load %arg0[%157, %c0_46, %c0_47] : memref<8x8x256xf32, #tpu.memory_space<vmem>>, vector<1x8x256xf32>
    %159 = vector.shape_cast %158 : vector<1x8x256xf32> to vector<8x256xf32>
    %160 = arith.truncf %155 : vector<8x64xf32> to vector<8x64xbf16>
    %cst_48 = arith.constant dense<0.000000e+00> : vector<8x256xf32>
    %161 = tpu.matmul %160, %0, %cst_48 {dimension_numbers = #tpu.dot_dimension_numbers<[1], [0], [0], [1], [0, 0, 1, 1], [], []>} : vector<8x64xbf16>, vector<64x256xbf16>, vector<8x256xf32> -> vector<8x256xf32>
    %162 = arith.addf %159, %161 : vector<8x256xf32>
    %163 = arith.negf %162 : vector<8x256xf32>
    %164 = math.exp %163 : vector<8x256xf32>
    %cst_49 = arith.constant 1.000000e+00 : f32
    %165 = vector.broadcast %cst_49 : f32 to vector<8x256xf32>
    %166 = arith.addf %165, %164 : vector<8x256xf32>
    %167 = arith.divf %165, %166 : vector<8x256xf32>
    %168 = vector.extract_strided_slice %167 {offsets = [0, 0], sizes = [8, 64], strides = [1, 1]} : vector<8x256xf32> to vector<8x64xf32>
    %169 = vector.extract_strided_slice %167 {offsets = [0, 64], sizes = [8, 64], strides = [1, 1]} : vector<8x256xf32> to vector<8x64xf32>
    %170 = vector.extract_strided_slice %167 {offsets = [0, 128], sizes = [8, 64], strides = [1, 1]} : vector<8x256xf32> to vector<8x64xf32>
    %171 = vector.extract_strided_slice %167 {offsets = [0, 192], sizes = [8, 64], strides = [1, 1]} : vector<8x256xf32> to vector<8x64xf32>
    %cst_50 = arith.constant 2.000000e+00 : f32
    %172 = vector.broadcast %cst_50 : f32 to vector<8x64xf32>
    %173 = arith.mulf %172, %171 : vector<8x64xf32>
    %cst_51 = arith.constant 1.000000e+00 : f32
    %174 = vector.broadcast %cst_51 : f32 to vector<8x64xf32>
    %175 = arith.subf %173, %174 : vector<8x64xf32>
    %176 = arith.mulf %169, %156 : vector<8x64xf32>
    %177 = arith.mulf %168, %175 : vector<8x64xf32>
    %178 = arith.addf %176, %177 : vector<8x64xf32>
    %179 = math.tanh %178 : vector<8x64xf32>
    %180 = arith.mulf %170, %179 : vector<8x64xf32>
    %181 = arith.index_cast %c5_i32 : i32 to index
    %c0_52 = arith.constant 0 : index
    %c0_53 = arith.constant 0 : index
    %182 = vector.load %arg1[%181, %c0_52, %c0_53] : memref<8x8x64xf32, #tpu.memory_space<vmem>>, vector<1x8x64xf32>
    %183 = vector.shape_cast %182 : vector<1x8x64xf32> to vector<8x64xf32>
    %cst_54 = arith.constant 0.000000e+00 : f32
    %184 = vector.broadcast %cst_54 : f32 to vector<8x64xf32>
    %185 = arith.cmpf one, %183, %184 : vector<8x64xf32>
    %186 = arith.select %185, %180, %155 : vector<8x64xi1>, vector<8x64xf32>
    %187 = arith.select %185, %178, %156 : vector<8x64xi1>, vector<8x64xf32>
    %c6_i32 = arith.constant 6 : i32
    %188 = arith.index_cast %c6_i32 : i32 to index
    %c0_55 = arith.constant 0 : index
    %c0_56 = arith.constant 0 : index
    %189 = vector.load %arg0[%188, %c0_55, %c0_56] : memref<8x8x256xf32, #tpu.memory_space<vmem>>, vector<1x8x256xf32>
    %190 = vector.shape_cast %189 : vector<1x8x256xf32> to vector<8x256xf32>
    %191 = arith.truncf %186 : vector<8x64xf32> to vector<8x64xbf16>
    %cst_57 = arith.constant dense<0.000000e+00> : vector<8x256xf32>
    %192 = tpu.matmul %191, %0, %cst_57 {dimension_numbers = #tpu.dot_dimension_numbers<[1], [0], [0], [1], [0, 0, 1, 1], [], []>} : vector<8x64xbf16>, vector<64x256xbf16>, vector<8x256xf32> -> vector<8x256xf32>
    %193 = arith.addf %190, %192 : vector<8x256xf32>
    %194 = arith.negf %193 : vector<8x256xf32>
    %195 = math.exp %194 : vector<8x256xf32>
    %cst_58 = arith.constant 1.000000e+00 : f32
    %196 = vector.broadcast %cst_58 : f32 to vector<8x256xf32>
    %197 = arith.addf %196, %195 : vector<8x256xf32>
    %198 = arith.divf %196, %197 : vector<8x256xf32>
    %199 = vector.extract_strided_slice %198 {offsets = [0, 0], sizes = [8, 64], strides = [1, 1]} : vector<8x256xf32> to vector<8x64xf32>
    %200 = vector.extract_strided_slice %198 {offsets = [0, 64], sizes = [8, 64], strides = [1, 1]} : vector<8x256xf32> to vector<8x64xf32>
    %201 = vector.extract_strided_slice %198 {offsets = [0, 128], sizes = [8, 64], strides = [1, 1]} : vector<8x256xf32> to vector<8x64xf32>
    %202 = vector.extract_strided_slice %198 {offsets = [0, 192], sizes = [8, 64], strides = [1, 1]} : vector<8x256xf32> to vector<8x64xf32>
    %cst_59 = arith.constant 2.000000e+00 : f32
    %203 = vector.broadcast %cst_59 : f32 to vector<8x64xf32>
    %204 = arith.mulf %203, %202 : vector<8x64xf32>
    %cst_60 = arith.constant 1.000000e+00 : f32
    %205 = vector.broadcast %cst_60 : f32 to vector<8x64xf32>
    %206 = arith.subf %204, %205 : vector<8x64xf32>
    %207 = arith.mulf %200, %187 : vector<8x64xf32>
    %208 = arith.mulf %199, %206 : vector<8x64xf32>
    %209 = arith.addf %207, %208 : vector<8x64xf32>
    %210 = math.tanh %209 : vector<8x64xf32>
    %211 = arith.mulf %201, %210 : vector<8x64xf32>
    %212 = arith.index_cast %c6_i32 : i32 to index
    %c0_61 = arith.constant 0 : index
    %c0_62 = arith.constant 0 : index
    %213 = vector.load %arg1[%212, %c0_61, %c0_62] : memref<8x8x64xf32, #tpu.memory_space<vmem>>, vector<1x8x64xf32>
    %214 = vector.shape_cast %213 : vector<1x8x64xf32> to vector<8x64xf32>
    %cst_63 = arith.constant 0.000000e+00 : f32
    %215 = vector.broadcast %cst_63 : f32 to vector<8x64xf32>
    %216 = arith.cmpf one, %214, %215 : vector<8x64xf32>
    %217 = arith.select %216, %211, %186 : vector<8x64xi1>, vector<8x64xf32>
    %218 = arith.select %216, %209, %187 : vector<8x64xi1>, vector<8x64xf32>
    %c7_i32 = arith.constant 7 : i32
    %219 = arith.index_cast %c7_i32 : i32 to index
    %c0_64 = arith.constant 0 : index
    %c0_65 = arith.constant 0 : index
    %220 = vector.load %arg0[%219, %c0_64, %c0_65] : memref<8x8x256xf32, #tpu.memory_space<vmem>>, vector<1x8x256xf32>
    %221 = vector.shape_cast %220 : vector<1x8x256xf32> to vector<8x256xf32>
    %222 = arith.truncf %217 : vector<8x64xf32> to vector<8x64xbf16>
    %cst_66 = arith.constant dense<0.000000e+00> : vector<8x256xf32>
    %223 = tpu.matmul %222, %0, %cst_66 {dimension_numbers = #tpu.dot_dimension_numbers<[1], [0], [0], [1], [0, 0, 1, 1], [], []>} : vector<8x64xbf16>, vector<64x256xbf16>, vector<8x256xf32> -> vector<8x256xf32>
    %224 = arith.addf %221, %223 : vector<8x256xf32>
    %225 = arith.negf %224 : vector<8x256xf32>
    %226 = math.exp %225 : vector<8x256xf32>
    %cst_67 = arith.constant 1.000000e+00 : f32
    %227 = vector.broadcast %cst_67 : f32 to vector<8x256xf32>
    %228 = arith.addf %227, %226 : vector<8x256xf32>
    %229 = arith.divf %227, %228 : vector<8x256xf32>
    %230 = vector.extract_strided_slice %229 {offsets = [0, 0], sizes = [8, 64], strides = [1, 1]} : vector<8x256xf32> to vector<8x64xf32>
    %231 = vector.extract_strided_slice %229 {offsets = [0, 64], sizes = [8, 64], strides = [1, 1]} : vector<8x256xf32> to vector<8x64xf32>
    %232 = vector.extract_strided_slice %229 {offsets = [0, 128], sizes = [8, 64], strides = [1, 1]} : vector<8x256xf32> to vector<8x64xf32>
    %233 = vector.extract_strided_slice %229 {offsets = [0, 192], sizes = [8, 64], strides = [1, 1]} : vector<8x256xf32> to vector<8x64xf32>
    %cst_68 = arith.constant 2.000000e+00 : f32
    %234 = vector.broadcast %cst_68 : f32 to vector<8x64xf32>
    %235 = arith.mulf %234, %233 : vector<8x64xf32>
    %cst_69 = arith.constant 1.000000e+00 : f32
    %236 = vector.broadcast %cst_69 : f32 to vector<8x64xf32>
    %237 = arith.subf %235, %236 : vector<8x64xf32>
    %238 = arith.mulf %231, %218 : vector<8x64xf32>
    %239 = arith.mulf %230, %237 : vector<8x64xf32>
    %240 = arith.addf %238, %239 : vector<8x64xf32>
    %241 = math.tanh %240 : vector<8x64xf32>
    %242 = arith.mulf %232, %241 : vector<8x64xf32>
    %243 = arith.index_cast %c7_i32 : i32 to index
    %c0_70 = arith.constant 0 : index
    %c0_71 = arith.constant 0 : index
    %244 = vector.load %arg1[%243, %c0_70, %c0_71] : memref<8x8x64xf32, #tpu.memory_space<vmem>>, vector<1x8x64xf32>
    %245 = vector.shape_cast %244 : vector<1x8x64xf32> to vector<8x64xf32>
    %cst_72 = arith.constant 0.000000e+00 : f32
    %246 = vector.broadcast %cst_72 : f32 to vector<8x64xf32>
    %247 = arith.cmpf one, %245, %246 : vector<8x64xf32>
    %248 = arith.select %247, %242, %217 : vector<8x64xi1>, vector<8x64xf32>
    %249 = arith.select %247, %240, %218 : vector<8x64xi1>, vector<8x64xf32>
    %c8_i32 = arith.constant 8 : i32
    %c0_73 = arith.constant 0 : index
    %c0_74 = arith.constant 0 : index
    %250 = vector.load %arg3[%c0_73, %c0_74] : memref<64x16xf32, #tpu.memory_space<vmem>>, vector<64x16xf32>
    %cst_75 = arith.constant dense<0.000000e+00> : vector<8x16xf32>
    %251 = tpu.matmul %248, %250, %cst_75 {dimension_numbers = #tpu.dot_dimension_numbers<[1], [0], [0], [1], [0, 0, 1, 1], [], []>} : vector<8x64xf32>, vector<64x16xf32>, vector<8x16xf32> -> vector<8x16xf32>
    %c0_76 = arith.constant 0 : index
    %c0_77 = arith.constant 0 : index
    %252 = vector.load %arg4[%c0_76, %c0_77] : memref<1x16xf32, #tpu.memory_space<vmem>>, vector<1x16xf32>
    %253 = vector.broadcast %252 : vector<1x16xf32> to vector<8x16xf32>
    %254 = arith.addf %251, %253 : vector<8x16xf32>
    %cst_78 = arith.constant 0.000000e+00 : f32
    %255 = vector.broadcast %cst_78 : f32 to vector<8x16xf32>
    %256 = arith.maximumf %254, %255 : vector<8x16xf32>
    %c0_79 = arith.constant 0 : index
    %c0_80 = arith.constant 0 : index
    %257 = vector.load %arg5[%c0_79, %c0_80] : memref<16x2xf32, #tpu.memory_space<vmem>>, vector<16x2xf32>
    %cst_81 = arith.constant dense<0.000000e+00> : vector<8x2xf32>
    %258 = tpu.matmul %256, %257, %cst_81 {dimension_numbers = #tpu.dot_dimension_numbers<[1], [0], [0], [1], [0, 0, 1, 1], [], []>} : vector<8x16xf32>, vector<16x2xf32>, vector<8x2xf32> -> vector<8x2xf32>
    %c0_82 = arith.constant 0 : index
    %c0_83 = arith.constant 0 : index
    %259 = vector.load %arg6[%c0_82, %c0_83] : memref<1x2xf32, #tpu.memory_space<vmem>>, vector<1x2xf32>
    %260 = vector.broadcast %259 : vector<1x2xf32> to vector<8x2xf32>
    %261 = arith.addf %258, %260 : vector<8x2xf32>
    %c0_84 = arith.constant 0 : index
    %c0_85 = arith.constant 0 : index
    %262 = vector.load %arg7[%c0_84, %c0_85] : memref<8x2xf32, #tpu.memory_space<vmem>>, vector<8x2xf32>
    tpu.vector_store %arg7[%c0_84, %c0_85], %261 {strides = array<i32>} : memref<8x2xf32, #tpu.memory_space<vmem>>, vector<8x2xf32>,
    return
  }
}

</mosaic_0001>

<llo_original>
// kernel: net_forward.1
$region0: #{net_forward.1}
  #allocation0 [shape = 'u32[]', space=smem, size = 0x4, offset = 0x4, fixed_abs, tag = 'smem constant byte address 0x4 - core index']
  #allocation1 [shape = 'u32[144,128]{1,0:T(1,128)}', space=vmem, size = 0x12000, scoped, tag = 'internal scratch']
  %s0 = inlined_call_operand.vmem [shape: f32[8,8,256], index: 0, kind: input, shape index: {}]
  %s1 = inlined_call_operand.vmem [shape: f32[8,8,64], index: 1, kind: input, shape index: {}]
  %s2 = inlined_call_operand.vmem [shape: bf16[64,256], index: 2, kind: input, shape index: {}]
  %s3 = inlined_call_operand.vmem [shape: f32[64,16], index: 3, kind: input, shape index: {}]
  %s4 = inlined_call_operand.vmem [shape: f32[1,16], index: 4, kind: input, shape index: {}]
  %s5 = inlined_call_operand.vmem [shape: f32[16,2], index: 5, kind: input, shape index: {}]
  %s6 = inlined_call_operand.vmem [shape: f32[1,2], index: 6, kind: input, shape index: {}]
  %s7 = inlined_call_operand.vmem [shape: f32[8,2], index: 7, kind: output, shape index: {}]
  %s8 = sld [smem:[#allocation0]]
  $region38: #{net_forward.1} parent=0
    _
  %s10 = ssub.s32 1, %s8
  %s11 = scalar_select 0, %s10, %s8
  // Predicated region
  $region2: #{net_forward.1} parent=0 // pred_check
    _
  $region3: #{net_forward.1} parent=0 // pred_check_branch
    %13 = sbr.rel (0) target = $region5
  $region4: #{net_forward.1} parent=0 // pred_region
    _
  $region5: #{net_forward.1} parent=0 // pred_fallthru
    _
  // Predicated region
  $region6: #{net_forward.1} parent=0 // pred_check
    _
  $region7: #{net_forward.1} parent=0 // pred_check_branch
    %15 = sbr.rel (0) target = $region9
  $region8: #{net_forward.1} parent=0 // pred_region
    _
  $region9: #{net_forward.1} parent=0 // pred_fallthru
    _
  // Predicated region
  $region10: #{net_forward.1} parent=0 // pred_check
    _
  $region11: #{net_forward.1} parent=0 // pred_check_branch
    %17 = sbr.rel (0) target = $region13
  $region12: #{net_forward.1} parent=0 // pred_region
    _
  $region13: #{net_forward.1} parent=0 // pred_fallthru
    _
  // Predicated region
  $region14: #{net_forward.1} parent=0 // pred_check
    _
  $region15: #{net_forward.1} parent=0 // pred_check_branch
    %19 = sbr.rel (0) target = $region17
  $region16: #{net_forward.1} parent=0 // pred_region
    _
  $region17: #{net_forward.1} parent=0 // pred_fallthru
    _
  // Predicated region
  $region18: #{net_forward.1} parent=0 // pred_check
    _
  $region19: #{net_forward.1} parent=0 // pred_check_branch
    %21 = sbr.rel (0) target = $region21
  $region20: #{net_forward.1} parent=0 // pred_region
    _
  $region21: #{net_forward.1} parent=0 // pred_fallthru
    _
  // Predicated region
  $region22: #{net_forward.1} parent=0 // pred_check
    _
  $region23: #{net_forward.1} parent=0 // pred_check_branch
    %23 = sbr.rel (0) target = $region25
  $region24: #{net_forward.1} parent=0 // pred_region
    _
  $region25: #{net_forward.1} parent=0 // pred_fallthru
    _
  // Predicated region
  $region26: #{net_forward.1} parent=0 // pred_check
    _
  $region27: #{net_forward.1} parent=0 // pred_check_branch
    %25 = sbr.rel (0) target = $region29
  $region28: #{net_forward.1} parent=0 // pred_region
    _
  $region29: #{net_forward.1} parent=0 // pred_fallthru
    _
  %v27 = vld [vmem:[%s2] sm:$0xff]
  %v28 = vld [vmem:[%s2 + $0x8] sm:$0xff]
  %v29 = vld [vmem:[%s2 + $0x10] sm:$0xff]
  %v30 = vld [vmem:[%s2 + $0x18] sm:$0xff]
  %v31 = vld [vmem:[%s2 + $0x20] sm:$0xff]
  %v32 = vld [vmem:[%s2 + $0x28] sm:$0xff]
  %v33 = vld [vmem:[%s2 + $0x30] sm:$0xff]
  %v34 = vld [vmem:[%s2 + $0x38] sm:$0xff]
  %v35 = vld [vmem:[%s0] sm:$0xff]
  %v36 = vld [vmem:[%s0 + $0x8] sm:$0xff]
  %v45 = vunpack.c.l.b16 %v27
  %v46 = vunpack.c.h.b16 %v27
  %v47 = vunpack.c.l.b16 %v28
  %v48 = vunpack.c.h.b16 %v28
  %v49 = vunpack.c.l.b16 %v29
  %v50 = vunpack.c.h.b16 %v29
  %v51 = vunpack.c.l.b16 %v30
  %v52 = vunpack.c.h.b16 %v30
  %v53 = vunpack.c.l.b16 %v31
  %v54 = vunpack.c.h.b16 %v31
  %v55 = vunpack.c.l.b16 %v32
  %v56 = vunpack.c.h.b16 %v32
  %v57 = vunpack.c.l.b16 %v33
  %v58 = vunpack.c.h.b16 %v33
  %v59 = vunpack.c.l.b16 %v34
  %v60 = vunpack.c.h.b16 %v34
  %v61 = vpack.c.b16 %v47, %v45
  %v62 = vpack.c.b16 %v48, %v46
  %v63 = vpack.c.b16 %v51, %v49
  %v64 = vpack.c.b16 %v52, %v50
  %v65 = vpack.c.b16 %v55, %v53
  %v66 = vpack.c.b16 %v56, %v54
  %v67 = vpack.c.b16 %v59, %v57
  %v68 = vpack.c.b16 %v60, %v58
  %vm77 = vcmask 523264
  %v79 = vsel %vm77, 0, 0
  %81 = vmatprep.subr.bf16.mxu0 %v62
  %82 = vmatpush1.bf16.msra.mxu0 %v61
  %83 = vmatprep.subr.bf16.mxu0 %v64
  %84 = vmatpush1.bf16.msra.mxu0 %v63
  %85 = vmatprep.subr.bf16.mxu0 %v66
  %86 = vmatpush1.bf16.msra.mxu0 %v65
  %87 = vmatprep.subr.bf16.mxu0 %v68
  %88 = vmatpush1.bf16.msra.mxu0 %v67
  %89 = vmatprep.subr.bf16.mxu0 0
  %90 = vmatpush1.bf16.msra.mxu0 0
  %91 = vmatprep.subr.bf16.mxu0 0
  %92 = vmatpush1.bf16.msra.mxu0 0
  %93 = vmatprep.subr.bf16.mxu0 0
  %94 = vmatpush1.bf16.msra.mxu0 0
  %95 = vmatprep.subr.bf16.mxu0 0
  %96 = vmatpush1.bf16.msra.mxu0 0
  %97 = vmatprep.subr.bf16.mxu0 0
  %98 = vmatpush1.bf16.msra.mxu0 0
  %99 = vmatprep.subr.bf16.mxu0 0
  %100 = vmatpush1.bf16.msra.mxu0 0
  %101 = vmatprep.subr.bf16.mxu0 0
  %102 = vmatpush1.bf16.msra.mxu0 0
  %103 = vmatprep.subr.bf16.mxu0 0
  %104 = vmatpush1.bf16.msra.mxu0 0
  %105 = vmatprep.subr.bf16.mxu0 0
  %106 = vmatpush1.bf16.msra.mxu0 0
  %107 = vmatprep.subr.bf16.mxu0 0
  %108 = vmatpush1.bf16.msra.mxu0 0
  %109 = vmatprep.subr.bf16.mxu0 0
  %110 = vmatpush1.bf16.msra.mxu0 0
  %111 = vmatprep.subr.bf16.mxu0 0
  %112 = vmatpush1.bf16.msra.mxu0 0
  %113 = vmatprep.mubr.bf16.mxu0 0
  %114 = vmatmul.mubr.bf16.gmra.mrb[0].mxu0 %v79
  %v115 = vpop.f32.mrb[0].mxu0
  %v116 = vadd.f32 0.0, %v115
  %v117 = vpop.f32.mrb[0].mxu0
  %v118 = vadd.f32 0.0, %v117
  %v119 = vpop.f32.mrb[0].mxu0
  %v120 = vpop.f32.mrb[0].mxu0
  %121 = vdwg.mxu0
  %v122 = vadd.f32 %v35, %v116
  %v123 = vadd.f32 %v36, %v118
  %v124 = vxor.u32 %v122, 2147483648
  %v125 = vxor.u32 %v123, 2147483648
  %v126 = vmul.f32 %v124, 1.442695
  %v127 = vpow.pop %v126
  %v128 = vmul.f32 %v125, 1.442695
  %v129 = vpow.pop %v128
  %v130 = vadd.f32 %v127, 1.0
  %v131 = vadd.f32 %v129, 1.0
  %v132 = vrcp.pop %v130
  %v133 = vmul.f32 1.0, %v132
  %v134 = vrcp.pop %v131
  %v135 = vmul.f32 1.0, %v134
  %v136 = vmul.f32 %v135, 2.0
  %v137 = vsub.f32 %v136, 1.0
  %v138 = vmul.f32 %v133, 0.0
  %140 = vrot.lane.b32.xlu0 %v137, 64
  %v141 = vpop.permute.xlu0 %140
  %v143 = vmul.f32 %v133, %v141
  %145 = vrot.lane.b32.xlu0 %v143, 64
  %v146 = vpop.permute.xlu0 %145
  %v148 = vadd.f32 %v138, %v146
  %v149 = vtanh.pop %v148
  %151 = vrot.lane.b32.xlu0 %v149, 64
  %v152 = vpop.permute.xlu0 %151
  %v154 = vmul.f32 %v135, %v152
  %v155 = vld [vmem:[%s1] sm:$0xff]
  %vm156 = vcmp.ne.f32.partialorder %v155, 0.0
  %v157 = vsel %vm156, %v154, 0.0
  %159 = vrot.lane.b32.xlu0 %v148, 64
  %v160 = vpop.permute.xlu0 %159
  %v162 = vsel %vm156, %v160, 0.0
  %s163 = scalar_lea.vmem %s0, 16
  %v164 = vld [vmem:[%s163] sm:$0xff]
  %v165 = vld [vmem:[%s163 + $0x8] sm:$0xff]
  %v166 = vpack.c.bf16 %v157, %v157
  %v168 = vsel %vm77, %v166, 0
  %170 = vmatprep.subr.bf16.mxu0 %v62
  %171 = vmatpush1.bf16.msra.mxu0 %v61
  %172 = vmatprep.subr.bf16.mxu0 %v64
  %173 = vmatpush1.bf16.msra.mxu0 %v63
  %174 = vmatprep.subr.bf16.mxu0 %v66
  %175 = vmatpush1.bf16.msra.mxu0 %v65
  %176 = vmatprep.subr.bf16.mxu0 %v68
  %177 = vmatpush1.bf16.msra.mxu0 %v67
  %178 = vmatprep.subr.bf16.mxu0 0
  %179 = vmatpush1.bf16.msra.mxu0 0
  %180 = vmatprep.subr.bf16.mxu0 0
  %181 = vmatpush1.bf16.msra.mxu0 0
  %182 = vmatprep.subr.bf16.mxu0 0
  %183 = vmatpush1.bf16.msra.mxu0 0
  %184 = vmatprep.subr.bf16.mxu0 0
  %185 = vmatpush1.bf16.msra.mxu0 0
  %186 = vmatprep.subr.bf16.mxu0 0
  %187 = vmatpush1.bf16.msra.mxu0 0
  %188 = vmatprep.subr.bf16.mxu0 0
  %189 = vmatpush1.bf16.msra.mxu0 0
  %190 = vmatprep.subr.bf16.mxu0 0
  %191 = vmatpush1.bf16.msra.mxu0 0
  %192 = vmatprep.subr.bf16.mxu0 0
  %193 = vmatpush1.bf16.msra.mxu0 0
  %194 = vmatprep.subr.bf16.mxu0 0
  %195 = vmatpush1.bf16.msra.mxu0 0
  %196 = vmatprep.subr.bf16.mxu0 0
  %197 = vmatpush1.bf16.msra.mxu0 0
  %198 = vmatprep.subr.bf16.mxu0 0
  %199 = vmatpush1.bf16.msra.mxu0 0
  %200 = vmatprep.subr.bf16.mxu0 0
  %201 = vmatpush1.bf16.msra.mxu0 0
  %202 = vmatprep.mubr.bf16.mxu0 0
  %203 = vmatmul.mubr.bf16.gmra.mrb[0].mxu0 %v168
  %v204 = vpop.f32.mrb[0].mxu0
  %v205 = vadd.f32 0.0, %v204
  %v206 = vpop.f32.mrb[0].mxu0
  %v207 = vadd.f32 0.0, %v206
  %v208 = vpop.f32.mrb[0].mxu0
  %v209 = vpop.f32.mrb[0].mxu0
  %210 = vdwg.mxu0
  %v211 = vadd.f32 %v164, %v205
  %v212 = vadd.f32 %v165, %v207
  %v213 = vxor.u32 %v211, 2147483648
  %v214 = vxor.u32 %v212, 2147483648
  %v215 = vmul.f32 %v213, 1.442695
  %v216 = vpow.pop %v215
  %v217 = vmul.f32 %v214, 1.442695
  %v218 = vpow.pop %v217
  %v219 = vadd.f32 %v216, 1.0
  %v220 = vadd.f32 %v218, 1.0
  %v221 = vrcp.pop %v219
  %v222 = vmul.f32 1.0, %v221
  %v223 = vrcp.pop %v220
  %v224 = vmul.f32 1.0, %v223
  %v225 = vmul.f32 %v224, 2.0
  %v226 = vsub.f32 %v225, 1.0
  %228 = vrot.lane.b32.xlu0 %v162, 64
  %v229 = vpop.permute.xlu0 %228
  %v231 = vmul.f32 %v222, %v229
  %233 = vrot.lane.b32.xlu0 %v226, 64
  %v234 = vpop.permute.xlu0 %233
  %v236 = vmul.f32 %v222, %v234
  %238 = vrot.lane.b32.xlu0 %v236, 64
  %v239 = vpop.permute.xlu0 %238
  %v241 = vadd.f32 %v231, %v239
  %v242 = vtanh.pop %v241
  %244 = vrot.lane.b32.xlu0 %v242, 64
  %v245 = vpop.permute.xlu0 %244
  %v247 = vmul.f32 %v224, %v245
  %s248 = scalar_lea.vmem %s1, 8
  %v249 = vld [vmem:[%s248] sm:$0xff]
  %vm250 = vcmp.ne.f32.partialorder %v249, 0.0
  %v251 = vsel %vm250, %v247, %v157
  %253 = vrot.lane.b32.xlu0 %v241, 64
  %v254 = vpop.permute.xlu0 %253
  %v256 = vsel %vm250, %v254, %v162
  %s257 = scalar_lea.vmem %s0, 32
  %v258 = vld [vmem:[%s257] sm:$0xff]
  %v259 = vld [vmem:[%s257 + $0x8] sm:$0xff]
  %v260 = vpack.c.bf16 %v251, %v251
  %v262 = vsel %vm77, %v260, 0
  %264 = vmatprep.subr.bf16.mxu0 %v62
  %265 = vmatpush1.bf16.msra.mxu0 %v61
  %266 = vmatprep.subr.bf16.mxu0 %v64
  %267 = vmatpush1.bf16.msra.mxu0 %v63
  %268 = vmatprep.subr.bf16.mxu0 %v66
  %269 = vmatpush1.bf16.msra.mxu0 %v65
  %270 = vmatprep.subr.bf16.mxu0 %v68
  %271 = vmatpush1.bf16.msra.mxu0 %v67
  %272 = vmatprep.subr.bf16.mxu0 0
  %273 = vmatpush1.bf16.msra.mxu0 0
  %274 = vmatprep.subr.bf16.mxu0 0
  %275 = vmatpush1.bf16.msra.mxu0 0
  %276 = vmatprep.subr.bf16.mxu0 0
  %277 = vmatpush1.bf16.msra.mxu0 0
  %278 = vmatprep.subr.bf16.mxu0 0
  %279 = vmatpush1.bf16.msra.mxu0 0
  %280 = vmatprep.subr.bf16.mxu0 0
  %281 = vmatpush1.bf16.msra.mxu0 0
  %282 = vmatprep.subr.bf16.mxu0 0
  %283 = vmatpush1.bf16.msra.mxu0 0
  %284 = vmatprep.subr.bf16.mxu0 0
  %285 = vmatpush1.bf16.msra.mxu0 0
  %286 = vmatprep.subr.bf16.mxu0 0
  %287 = vmatpush1.bf16.msra.mxu0 0
  %288 = vmatprep.subr.bf16.mxu0 0
  %289 = vmatpush1.bf16.msra.mxu0 0
  %290 = vmatprep.subr.bf16.mxu0 0
  %291 = vmatpush1.bf16.msra.mxu0 0
  %292 = vmatprep.subr.bf16.mxu0 0
  %293 = vmatpush1.bf16.msra.mxu0 0
  %294 = vmatprep.subr.bf16.mxu0 0
  %295 = vmatpush1.bf16.msra.mxu0 0
  %296 = vmatprep.mubr.bf16.mxu0 0
  %297 = vmatmul.mubr.bf16.gmra.mrb[0].mxu0 %v262
  %v298 = vpop.f32.mrb[0].mxu0
  %v299 = vadd.f32 0.0, %v298
  %v300 = vpop.f32.mrb[0].mxu0
  %v301 = vadd.f32 0.0, %v300
  %v302 = vpop.f32.mrb[0].mxu0
  %v303 = vpop.f32.mrb[0].mxu0
  %304 = vdwg.mxu0
  %v305 = vadd.f32 %v258, %v299
  %v306 = vadd.f32 %v259, %v301
  %v307 = vxor.u32 %v305, 2147483648
  %v308 = vxor.u32 %v306, 2147483648
  %v309 = vmul.f32 %v307, 1.442695
  %v310 = vpow.pop %v309
  %v311 = vmul.f32 %v308, 1.442695
  %v312 = vpow.pop %v311
  %v313 = vadd.f32 %v310, 1.0
  %v314 = vadd.f32 %v312, 1.0
  %v315 = vrcp.pop %v313
  %v316 = vmul.f32 1.0, %v315
  %v317 = vrcp.pop %v314
  %v318 = vmul.f32 1.0, %v317
  %v319 = vmul.f32 %v318, 2.0
  %v320 = vsub.f32 %v319, 1.0
  %322 = vrot.lane.b32.xlu0 %v256, 64
  %v323 = vpop.permute.xlu0 %322
  %v325 = vmul.f32 %v316, %v323
  %327 = vrot.lane.b32.xlu0 %v320, 64
  %v328 = vpop.permute.xlu0 %327
  %v330 = vmul.f32 %v316, %v328
  %332 = vrot.lane.b32.xlu0 %v330, 64
  %v333 = vpop.permute.xlu0 %332
  %v335 = vadd.f32 %v325, %v333
  %v336 = vtanh.pop %v335
  %338 = vrot.lane.b32.xlu0 %v336, 64
  %v339 = vpop.permute.xlu0 %338
  %v341 = vmul.f32 %v318, %v339
  %s342 = scalar_lea.vmem %s1, 16
  %v343 = vld [vmem:[%s342] sm:$0xff]
  %vm344 = vcmp.ne.f32.partialorder %v343, 0.0
  %v345 = vsel %vm344, %v341, %v251
  %347 = vrot.lane.b32.xlu0 %v335, 64
  %v348 = vpop.permute.xlu0 %347
  %v350 = vsel %vm344, %v348, %v256
  %s351 = scalar_lea.vmem %s0, 48
  %v352 = vld [vmem:[%s351] sm:$0xff]
  %v353 = vld [vmem:[%s351 + $0x8] sm:$0xff]
  %v354 = vpack.c.bf16 %v345, %v345
  %v356 = vsel %vm77, %v354, 0
  %358 = vmatprep.subr.bf16.mxu0 %v62
  %359 = vmatpush1.bf16.msra.mxu0 %v61
  %360 = vmatprep.subr.bf16.mxu0 %v64
  %361 = vmatpush1.bf16.msra.mxu0 %v63
  %362 = vmatprep.subr.bf16.mxu0 %v66
  %363 = vmatpush1.bf16.msra.mxu0 %v65
  %364 = vmatprep.subr.bf16.mxu0 %v68
  %365 = vmatpush1.bf16.msra.mxu0 %v67
  %366 = vmatprep.subr.bf16.mxu0 0
  %367 = vmatpush1.bf16.msra.mxu0 0
  %368 = vmatprep.subr.bf16.mxu0 0
  %369 = vmatpush1.bf16.msra.mxu0 0
  %370 = vmatprep.subr.bf16.mxu0 0
  %371 = vmatpush1.bf16.msra.mxu0 0
  %372 = vmatprep.subr.bf16.mxu0 0
  %373 = vmatpush1.bf16.msra.mxu0 0
  %374 = vmatprep.subr.bf16.mxu0 0
  %375 = vmatpush1.bf16.msra.mxu0 0
  %376 = vmatprep.subr.bf16.mxu0 0
  %377 = vmatpush1.bf16.msra.mxu0 0
  %378 = vmatprep.subr.bf16.mxu0 0
  %379 = vmatpush1.bf16.msra.mxu0 0
  %380 = vmatprep.subr.bf16.mxu0 0
  %381 = vmatpush1.bf16.msra.mxu0 0
  %382 = vmatprep.subr.bf16.mxu0 0
  %383 = vmatpush1.bf16.msra.mxu0 0
  %384 = vmatprep.subr.bf16.mxu0 0
  %385 = vmatpush1.bf16.msra.mxu0 0
  %386 = vmatprep.subr.bf16.mxu0 0
  %387 = vmatpush1.bf16.msra.mxu0 0
  %388 = vmatprep.subr.bf16.mxu0 0
  %389 = vmatpush1.bf16.msra.mxu0 0
  %390 = vmatprep.mubr.bf16.mxu0 0
  %391 = vmatmul.mubr.bf16.gmra.mrb[0].mxu0 %v356
  %v392 = vpop.f32.mrb[0].mxu0
  %v393 = vadd.f32 0.0, %v392
  %v394 = vpop.f32.mrb[0].mxu0
  %v395 = vadd.f32 0.0, %v394
  %v396 = vpop.f32.mrb[0].mxu0
  %v397 = vpop.f32.mrb[0].mxu0
  %398 = vdwg.mxu0
  %v399 = vadd.f32 %v352, %v393
  %v400 = vadd.f32 %v353, %v395
  %v401 = vxor.u32 %v399, 2147483648
  %v402 = vxor.u32 %v400, 2147483648
  %v403 = vmul.f32 %v401, 1.442695
  %v404 = vpow.pop %v403
  %v405 = vmul.f32 %v402, 1.442695
  %v406 = vpow.pop %v405
  %v407 = vadd.f32 %v404, 1.0
  %v408 = vadd.f32 %v406, 1.0
  %v409 = vrcp.pop %v407
  %v410 = vmul.f32 1.0, %v409
  %v411 = vrcp.pop %v408
  %v412 = vmul.f32 1.0, %v411
  %v413 = vmul.f32 %v412, 2.0
  %v414 = vsub.f32 %v413, 1.0
  %416 = vrot.lane.b32.xlu0 %v350, 64
  %v417 = vpop.permute.xlu0 %416
  %v419 = vmul.f32 %v410, %v417
  %421 = vrot.lane.b32.xlu0 %v414, 64
  %v422 = vpop.permute.xlu0 %421
  %v424 = vmul.f32 %v410, %v422
  %426 = vrot.lane.b32.xlu0 %v424, 64
  %v427 = vpop.permute.xlu0 %426
  %v429 = vadd.f32 %v419, %v427
  %v430 = vtanh.pop %v429
  %432 = vrot.lane.b32.xlu0 %v430, 64
  %v433 = vpop.permute.xlu0 %432
  %v435 = vmul.f32 %v412, %v433
  %s436 = scalar_lea.vmem %s1, 24
  %v437 = vld [vmem:[%s436] sm:$0xff]
  %vm438 = vcmp.ne.f32.partialorder %v437, 0.0
  %v439 = vsel %vm438, %v435, %v345
  %441 = vrot.lane.b32.xlu0 %v429, 64
  %v442 = vpop.permute.xlu0 %441
  %v444 = vsel %vm438, %v442, %v350
  %s445 = scalar_lea.vmem %s0, 64
  %v446 = vld [vmem:[%s445] sm:$0xff]
  %v447 = vld [vmem:[%s445 + $0x8] sm:$0xff]
  %v448 = vpack.c.bf16 %v439, %v439
  %v450 = vsel %vm77, %v448, 0
  %452 = vmatprep.subr.bf16.mxu0 %v62
  %453 = vmatpush1.bf16.msra.mxu0 %v61
  %454 = vmatprep.subr.bf16.mxu0 %v64
  %455 = vmatpush1.bf16.msra.mxu0 %v63
  %456 = vmatprep.subr.bf16.mxu0 %v66
  %457 = vmatpush1.bf16.msra.mxu0 %v65
  %458 = vmatprep.subr.bf16.mxu0 %v68
  %459 = vmatpush1.bf16.msra.mxu0 %v67
  %460 = vmatprep.subr.bf16.mxu0 0
  %461 = vmatpush1.bf16.msra.mxu0 0
  %462 = vmatprep.subr.bf16.mxu0 0
  %463 = vmatpush1.bf16.msra.mxu0 0
  %464 = vmatprep.subr.bf16.mxu0 0
  %465 = vmatpush1.bf16.msra.mxu0 0
  %466 = vmatprep.subr.bf16.mxu0 0
  %467 = vmatpush1.bf16.msra.mxu0 0
  %468 = vmatprep.subr.bf16.mxu0 0
  %469 = vmatpush1.bf16.msra.mxu0 0
  %470 = vmatprep.subr.bf16.mxu0 0
  %471 = vmatpush1.bf16.msra.mxu0 0
  %472 = vmatprep.subr.bf16.mxu0 0
  %473 = vmatpush1.bf16.msra.mxu0 0
  %474 = vmatprep.subr.bf16.mxu0 0
  %475 = vmatpush1.bf16.msra.mxu0 0
  %476 = vmatprep.subr.bf16.mxu0 0
  %477 = vmatpush1.bf16.msra.mxu0 0
  %478 = vmatprep.subr.bf16.mxu0 0
  %479 = vmatpush1.bf16.msra.mxu0 0
  %480 = vmatprep.subr.bf16.mxu0 0
  %481 = vmatpush1.bf16.msra.mxu0 0
  %482 = vmatprep.subr.bf16.mxu0 0
  %483 = vmatpush1.bf16.msra.mxu0 0
  %484 = vmatprep.mubr.bf16.mxu0 0
  %485 = vmatmul.mubr.bf16.gmra.mrb[0].mxu0 %v450
  %v486 = vpop.f32.mrb[0].mxu0
  %v487 = vadd.f32 0.0, %v486
  %v488 = vpop.f32.mrb[0].mxu0
  %v489 = vadd.f32 0.0, %v488
  %v490 = vpop.f32.mrb[0].mxu0
  %v491 = vpop.f32.mrb[0].mxu0
  %492 = vdwg.mxu0
  %v493 = vadd.f32 %v446, %v487
  %v494 = vadd.f32 %v447, %v489
  %v495 = vxor.u32 %v493, 2147483648
  %v496 = vxor.u32 %v494, 2147483648
  %v497 = vmul.f32 %v495, 1.442695
  %v498 = vpow.pop %v497
  %v499 = vmul.f32 %v496, 1.442695
  %v500 = vpow.pop %v499
  %v501 = vadd.f32 %v498, 1.0
  %v502 = vadd.f32 %v500, 1.0
  %v503 = vrcp.pop %v501
  %v504 = vmul.f32 1.0, %v503
  %v505 = vrcp.pop %v502
  %v506 = vmul.f32 1.0, %v505
  %v507 = vmul.f32 %v506, 2.0
  %v508 = vsub.f32 %v507, 1.0
  %510 = vrot.lane.b32.xlu0 %v444, 64
  %v511 = vpop.permute.xlu0 %510
  %v513 = vmul.f32 %v504, %v511
  %515 = vrot.lane.b32.xlu0 %v508, 64
  %v516 = vpop.permute.xlu0 %515
  %v518 = vmul.f32 %v504, %v516
  %520 = vrot.lane.b32.xlu0 %v518, 64
  %v521 = vpop.permute.xlu0 %520
  %v523 = vadd.f32 %v513, %v521
  %v524 = vtanh.pop %v523
  %526 = vrot.lane.b32.xlu0 %v524, 64
  %v527 = vpop.permute.xlu0 %526
  %v529 = vmul.f32 %v506, %v527
  %s530 = scalar_lea.vmem %s1, 32
  %v531 = vld [vmem:[%s530] sm:$0xff]
  %vm532 = vcmp.ne.f32.partialorder %v531, 0.0
  %v533 = vsel %vm532, %v529, %v439
  %535 = vrot.lane.b32.xlu0 %v523, 64
  %v536 = vpop.permute.xlu0 %535
  %v538 = vsel %vm532, %v536, %v444
  %s539 = scalar_lea.vmem %s0, 80
  %v540 = vld [vmem:[%s539] sm:$0xff]
  %v541 = vld [vmem:[%s539 + $0x8] sm:$0xff]
  %v542 = vpack.c.bf16 %v533, %v533
  %v544 = vsel %vm77, %v542, 0
  %546 = vmatprep.subr.bf16.mxu0 %v62
  %547 = vmatpush1.bf16.msra.mxu0 %v61
  %548 = vmatprep.subr.bf16.mxu0 %v64
  %549 = vmatpush1.bf16.msra.mxu0 %v63
  %550 = vmatprep.subr.bf16.mxu0 %v66
  %551 = vmatpush1.bf16.msra.mxu0 %v65
  %552 = vmatprep.subr.bf16.mxu0 %v68
  %553 = vmatpush1.bf16.msra.mxu0 %v67
  %554 = vmatprep.subr.bf16.mxu0 0
  %555 = vmatpush1.bf16.msra.mxu0 0
  %556 = vmatprep.subr.bf16.mxu0 0
  %557 = vmatpush1.bf16.msra.mxu0 0
  %558 = vmatprep.subr.bf16.mxu0 0
  %559 = vmatpush1.bf16.msra.mxu0 0
  %560 = vmatprep.subr.bf16.mxu0 0
  %561 = vmatpush1.bf16.msra.mxu0 0
  %562 = vmatprep.subr.bf16.mxu0 0
  %563 = vmatpush1.bf16.msra.mxu0 0
  %564 = vmatprep.subr.bf16.mxu0 0
  %565 = vmatpush1.bf16.msra.mxu0 0
  %566 = vmatprep.subr.bf16.mxu0 0
  %567 = vmatpush1.bf16.msra.mxu0 0
  %568 = vmatprep.subr.bf16.mxu0 0
  %569 = vmatpush1.bf16.msra.mxu0 0
  %570 = vmatprep.subr.bf16.mxu0 0
  %571 = vmatpush1.bf16.msra.mxu0 0
  %572 = vmatprep.subr.bf16.mxu0 0
  %573 = vmatpush1.bf16.msra.mxu0 0
  %574 = vmatprep.subr.bf16.mxu0 0
  %575 = vmatpush1.bf16.msra.mxu0 0
  %576 = vmatprep.subr.bf16.mxu0 0
  %577 = vmatpush1.bf16.msra.mxu0 0
  %578 = vmatprep.mubr.bf16.mxu0 0
  %579 = vmatmul.mubr.bf16.gmra.mrb[0].mxu0 %v544
  %v580 = vpop.f32.mrb[0].mxu0
  %v581 = vadd.f32 0.0, %v580
  %v582 = vpop.f32.mrb[0].mxu0
  %v583 = vadd.f32 0.0, %v582
  %v584 = vpop.f32.mrb[0].mxu0
  %v585 = vpop.f32.mrb[0].mxu0
  %586 = vdwg.mxu0
  %v587 = vadd.f32 %v540, %v581
  %v588 = vadd.f32 %v541, %v583
  %v589 = vxor.u32 %v587, 2147483648
  %v590 = vxor.u32 %v588, 2147483648
  %v591 = vmul.f32 %v589, 1.442695
  %v592 = vpow.pop %v591
  %v593 = vmul.f32 %v590, 1.442695
  %v594 = vpow.pop %v593
  %v595 = vadd.f32 %v592, 1.0
  %v596 = vadd.f32 %v594, 1.0
  %v597 = vrcp.pop %v595
  %v598 = vmul.f32 1.0, %v597
  %v599 = vrcp.pop %v596
  %v600 = vmul.f32 1.0, %v599
  %v601 = vmul.f32 %v600, 2.0
  %v602 = vsub.f32 %v601, 1.0
  %604 = vrot.lane.b32.xlu0 %v538, 64
  %v605 = vpop.permute.xlu0 %604
  %v607 = vmul.f32 %v598, %v605
  %609 = vrot.lane.b32.xlu0 %v602, 64
  %v610 = vpop.permute.xlu0 %609
  %v612 = vmul.f32 %v598, %v610
  %614 = vrot.lane.b32.xlu0 %v612, 64
  %v615 = vpop.permute.xlu0 %614
  %v617 = vadd.f32 %v607, %v615
  %v618 = vtanh.pop %v617
  %620 = vrot.lane.b32.xlu0 %v618, 64
  %v621 = vpop.permute.xlu0 %620
  %v623 = vmul.f32 %v600, %v621
  %s624 = scalar_lea.vmem %s1, 40
  %v625 = vld [vmem:[%s624] sm:$0xff]
  %vm626 = vcmp.ne.f32.partialorder %v625, 0.0
  %v627 = vsel %vm626, %v623, %v533
  %629 = vrot.lane.b32.xlu0 %v617, 64
  %v630 = vpop.permute.xlu0 %629
  %v632 = vsel %vm626, %v630, %v538
  %s633 = scalar_lea.vmem %s0, 96
  %v634 = vld [vmem:[%s633] sm:$0xff]
  %v635 = vld [vmem:[%s633 + $0x8] sm:$0xff]
  %v636 = vpack.c.bf16 %v627, %v627
  %v638 = vsel %vm77, %v636, 0
  %640 = vmatprep.subr.bf16.mxu0 %v62
  %641 = vmatpush1.bf16.msra.mxu0 %v61
  %642 = vmatprep.subr.bf16.mxu0 %v64
  %643 = vmatpush1.bf16.msra.mxu0 %v63
  %644 = vmatprep.subr.bf16.mxu0 %v66
  %645 = vmatpush1.bf16.msra.mxu0 %v65
  %646 = vmatprep.subr.bf16.mxu0 %v68
  %647 = vmatpush1.bf16.msra.mxu0 %v67
  %648 = vmatprep.subr.bf16.mxu0 0
  %649 = vmatpush1.bf16.msra.mxu0 0
  %650 = vmatprep.subr.bf16.mxu0 0
  %651 = vmatpush1.bf16.msra.mxu0 0
  %652 = vmatprep.subr.bf16.mxu0 0
  %653 = vmatpush1.bf16.msra.mxu0 0
  %654 = vmatprep.subr.bf16.mxu0 0
  %655 = vmatpush1.bf16.msra.mxu0 0
  %656 = vmatprep.subr.bf16.mxu0 0
  %657 = vmatpush1.bf16.msra.mxu0 0
  %658 = vmatprep.subr.bf16.mxu0 0
  %659 = vmatpush1.bf16.msra.mxu0 0
  %660 = vmatprep.subr.bf16.mxu0 0
  %661 = vmatpush1.bf16.msra.mxu0 0
  %662 = vmatprep.subr.bf16.mxu0 0
  %663 = vmatpush1.bf16.msra.mxu0 0
  %664 = vmatprep.subr.bf16.mxu0 0
  %665 = vmatpush1.bf16.msra.mxu0 0
  %666 = vmatprep.subr.bf16.mxu0 0
  %667 = vmatpush1.bf16.msra.mxu0 0
  %668 = vmatprep.subr.bf16.mxu0 0
  %669 = vmatpush1.bf16.msra.mxu0 0
  %670 = vmatprep.subr.bf16.mxu0 0
  %671 = vmatpush1.bf16.msra.mxu0 0
  %672 = vmatprep.mubr.bf16.mxu0 0
  %673 = vmatmul.mubr.bf16.gmra.mrb[0].mxu0 %v638
  %v674 = vpop.f32.mrb[0].mxu0
  %v675 = vadd.f32 0.0, %v674
  %v676 = vpop.f32.mrb[0].mxu0
  %v677 = vadd.f32 0.0, %v676
  %v678 = vpop.f32.mrb[0].mxu0
  %v679 = vpop.f32.mrb[0].mxu0
  %680 = vdwg.mxu0
  %v681 = vadd.f32 %v634, %v675
  %v682 = vadd.f32 %v635, %v677
  %v683 = vxor.u32 %v681, 2147483648
  %v684 = vxor.u32 %v682, 2147483648
  %v685 = vmul.f32 %v683, 1.442695
  %v686 = vpow.pop %v685
  %v687 = vmul.f32 %v684, 1.442695
  %v688 = vpow.pop %v687
  %v689 = vadd.f32 %v686, 1.0
  %v690 = vadd.f32 %v688, 1.0
  %v691 = vrcp.pop %v689
  %v692 = vmul.f32 1.0, %v691
  %v693 = vrcp.pop %v690
  %v694 = vmul.f32 1.0, %v693
  %v695 = vmul.f32 %v694, 2.0
  %v696 = vsub.f32 %v695, 1.0
  %698 = vrot.lane.b32.xlu0 %v632, 64
  %v699 = vpop.permute.xlu0 %698
  %v701 = vmul.f32 %v692, %v699
  %703 = vrot.lane.b32.xlu0 %v696, 64
  %v704 = vpop.permute.xlu0 %703
  %v706 = vmul.f32 %v692, %v704
  %708 = vrot.lane.b32.xlu0 %v706, 64
  %v709 = vpop.permute.xlu0 %708
  %v711 = vadd.f32 %v701, %v709
  %v712 = vtanh.pop %v711
  %714 = vrot.lane.b32.xlu0 %v712, 64
  %v715 = vpop.permute.xlu0 %714
  %v717 = vmul.f32 %v694, %v715
  %s718 = scalar_lea.vmem %s1, 48
  %v719 = vld [vmem:[%s718] sm:$0xff]
  %vm720 = vcmp.ne.f32.partialorder %v719, 0.0
  %v721 = vsel %vm720, %v717, %v627
  %723 = vrot.lane.b32.xlu0 %v711, 64
  %v724 = vpop.permute.xlu0 %723
  %v726 = vsel %vm720, %v724, %v632
  %s727 = scalar_lea.vmem %s0, 112
  %v728 = vld [vmem:[%s727] sm:$0xff]
  %v729 = vld [vmem:[%s727 + $0x8] sm:$0xff]
  %v730 = vpack.c.bf16 %v721, %v721
  %v732 = vsel %vm77, %v730, 0
  %734 = vmatprep.subr.bf16.mxu0 %v62
  %735 = vmatpush1.bf16.msra.mxu0 %v61
  %736 = vmatprep.subr.bf16.mxu0 %v64
  %737 = vmatpush1.bf16.msra.mxu0 %v63
  %738 = vmatprep.subr.bf16.mxu0 %v66
  %739 = vmatpush1.bf16.msra.mxu0 %v65
  %740 = vmatprep.subr.bf16.mxu0 %v68
  %741 = vmatpush1.bf16.msra.mxu0 %v67
  %742 = vmatprep.subr.bf16.mxu0 0
  %743 = vmatpush1.bf16.msra.mxu0 0
  %744 = vmatprep.subr.bf16.mxu0 0
  %745 = vmatpush1.bf16.msra.mxu0 0
  %746 = vmatprep.subr.bf16.mxu0 0
  %747 = vmatpush1.bf16.msra.mxu0 0
  %748 = vmatprep.subr.bf16.mxu0 0
  %749 = vmatpush1.bf16.msra.mxu0 0
  %750 = vmatprep.subr.bf16.mxu0 0
  %751 = vmatpush1.bf16.msra.mxu0 0
  %752 = vmatprep.subr.bf16.mxu0 0
  %753 = vmatpush1.bf16.msra.mxu0 0
  %754 = vmatprep.subr.bf16.mxu0 0
  %755 = vmatpush1.bf16.msra.mxu0 0
  %756 = vmatprep.subr.bf16.mxu0 0
  %757 = vmatpush1.bf16.msra.mxu0 0
  %758 = vmatprep.subr.bf16.mxu0 0
  %759 = vmatpush1.bf16.msra.mxu0 0
  %760 = vmatprep.subr.bf16.mxu0 0
  %761 = vmatpush1.bf16.msra.mxu0 0
  %762 = vmatprep.subr.bf16.mxu0 0
  %763 = vmatpush1.bf16.msra.mxu0 0
  %764 = vmatprep.subr.bf16.mxu0 0
  %765 = vmatpush1.bf16.msra.mxu0 0
  %766 = vmatprep.mubr.bf16.mxu0 0
  %767 = vmatmul.mubr.bf16.gmra.mrb[0].mxu0 %v732
  %v768 = vpop.f32.mrb[0].mxu0
  %v769 = vadd.f32 0.0, %v768
  %v770 = vpop.f32.mrb[0].mxu0
  %v771 = vadd.f32 0.0, %v770
  %v772 = vpop.f32.mrb[0].mxu0
  %v773 = vpop.f32.mrb[0].mxu0
  %774 = vdwg.mxu0
  %v775 = vadd.f32 %v728, %v769
  %v776 = vadd.f32 %v729, %v771
  %v777 = vxor.u32 %v775, 2147483648
  %v778 = vxor.u32 %v776, 2147483648
  %v779 = vmul.f32 %v777, 1.442695
  %v780 = vpow.pop %v779
  %v781 = vmul.f32 %v778, 1.442695
  %v782 = vpow.pop %v781
  %v783 = vadd.f32 %v780, 1.0
  %v784 = vadd.f32 %v782, 1.0
  %v785 = vrcp.pop %v783
  %v786 = vmul.f32 1.0, %v785
  %v787 = vrcp.pop %v784
  %v788 = vmul.f32 1.0, %v787
  %v789 = vmul.f32 %v788, 2.0
  %v790 = vsub.f32 %v789, 1.0
  %792 = vrot.lane.b32.xlu0 %v726, 64
  %v793 = vpop.permute.xlu0 %792
  %v795 = vmul.f32 %v786, %v793
  %797 = vrot.lane.b32.xlu0 %v790, 64
  %v798 = vpop.permute.xlu0 %797
  %v800 = vmul.f32 %v786, %v798
  %802 = vrot.lane.b32.xlu0 %v800, 64
  %v803 = vpop.permute.xlu0 %802
  %v805 = vadd.f32 %v795, %v803
  %v806 = vtanh.pop %v805
  %808 = vrot.lane.b32.xlu0 %v806, 64
  %v809 = vpop.permute.xlu0 %808
  %v811 = vmul.f32 %v788, %v809
  %s812 = scalar_lea.vmem %s1, 56
  %v813 = vld [vmem:[%s812] sm:$0xff]
  %vm814 = vcmp.ne.f32.partialorder %v813, 0.0
  %v815 = vsel %vm814, %v811, %v721
  %v816 = vld [vmem:[%s3] sm:$0xff]
  %v817 = vld [vmem:[%s3 + $0x8] sm:$0xff]
  %v818 = vld [vmem:[%s3 + $0x10] sm:$0xff]
  %v819 = vld [vmem:[%s3 + $0x18] sm:$0xff]
  %v820 = vld [vmem:[%s3 + $0x20] sm:$0xff]
  %v821 = vld [vmem:[%s3 + $0x28] sm:$0xff]
  %v822 = vld [vmem:[%s3 + $0x30] sm:$0xff]
  %v823 = vld [vmem:[%s3 + $0x38] sm:$0xff]
  %v824 = vld [vmem:[%s4] sm:$0x1]
  %v826 = vlaneseq
  %v827 = vshrl.u32 %v826, 7
  %v828 = vsub.s32 0, %v827
  %v829 = vrot.slane %v824, %v828
  %v832 = vsel %vm77, %v815, 0
  %834 = vmatprep.subr.mxu0 0.0
  %835 = vmatpush1.msra.mxu0 %v816
  %836 = vmatprep.subr.mxu0 0.0
  %837 = vmatpush1.msra.mxu0 %v817
  %838 = vmatprep.subr.mxu0 0.0
  %839 = vmatpush1.msra.mxu0 %v818
  %840 = vmatprep.subr.mxu0 0.0
  %841 = vmatpush1.msra.mxu0 %v819
  %842 = vmatprep.subr.mxu0 0.0
  %843 = vmatpush1.msra.mxu0 %v820
  %844 = vmatprep.subr.mxu0 0.0
  %845 = vmatpush1.msra.mxu0 %v821
  %846 = vmatprep.subr.mxu0 0.0
  %847 = vmatpush1.msra.mxu0 %v822
  %848 = vmatprep.subr.mxu0 0.0
  %849 = vmatpush1.msra.mxu0 %v823
  %850 = vmatprep.subr.mxu0 0.0
  %851 = vmatpush1.msra.mxu0 0.0
  %852 = vmatprep.subr.mxu0 0.0
  %853 = vmatpush1.msra.mxu0 0.0
  %854 = vmatprep.subr.mxu0 0.0
  %855 = vmatpush1.msra.mxu0 0.0
  %856 = vmatprep.subr.mxu0 0.0
  %857 = vmatpush1.msra.mxu0 0.0
  %858 = vmatprep.subr.mxu0 0.0
  %859 = vmatpush1.msra.mxu0 0.0
  %860 = vmatprep.subr.mxu0 0.0
  %861 = vmatpush1.msra.mxu0 0.0
  %862 = vmatprep.subr.mxu0 0.0
  %863 = vmatpush1.msra.mxu0 0.0
  %864 = vmatprep.subr.mxu0 0.0
  %865 = vmatpush1.msra.mxu0 0.0
  %866 = vmatprep.subr.mxu0 0.0
  %867 = vmatpush1.msra.mxu0 0.0
  %868 = vmatprep.subr.mxu0 0.0
  %869 = vmatpush1.msra.mxu0 0.0
  %870 = vmatprep.subr.mxu0 0.0
  %871 = vmatpush1.msra.mxu0 0.0
  %872 = vmatprep.subr.mxu0 0.0
  %873 = vmatpush1.msra.mxu0 0.0
  %874 = vmatprep.subr.mxu0 0.0
  %875 = vmatpush1.msra.mxu0 0.0
  %876 = vmatprep.subr.mxu0 0.0
  %877 = vmatpush1.msra.mxu0 0.0
  %878 = vmatprep.subr.mxu0 0.0
  %879 = vmatpush1.msra.mxu0 0.0
  %880 = vmatprep.subr.mxu0 0.0
  %881 = vmatpush1.msra.mxu0 0.0
  %882 = vmatprep.subr.mxu0 0.0
  %883 = vmatpush1.msra.mxu0 0.0
  %884 = vmatprep.subr.mxu0 0.0
  %885 = vmatpush1.msra.mxu0 0.0
  %886 = vmatprep.subr.mxu0 0.0
  %887 = vmatpush1.msra.mxu0 0.0
  %888 = vmatprep.subr.mxu0 0.0
  %889 = vmatpush1.msra.mxu0 0.0
  %890 = vmatprep.subr.mxu0 0.0
  %891 = vmatpush1.msra.mxu0 0.0
  %892 = vmatprep.subr.mxu0 0.0
  %893 = vmatpush1.msra.mxu0 0.0
  %894 = vmatprep.subr.mxu0 0.0
  %895 = vmatpush1.msra.mxu0 0.0
  %896 = vmatprep.subr.mxu0 0.0
  %897 = vmatpush1.msra.mxu0 0.0
  %898 = vmatprep.mubr.f32.mxu0 0.0
  %899 = vmatmul.mubr.f32.gmra.mrb[0].mxu0 %v832
  %v900 = vpop.f32.mrb[0].mxu0
  %v901 = vadd.f32 %v829, %v900
  %v902 = vpop.f32.mrb[0].mxu0
  %903 = vdwg.mxu0
  %v904 = vmax.f32 %v901, 0.0
  %v905 = vld [vmem:[%s5] sm:$0xff]
  %v906 = vld [vmem:[%s5 + $0x8] sm:$0xff]
  %v907 = vld [vmem:[%s6] sm:$0x1]
  %v909 = vlaneseq
  %v910 = vshrl.u32 %v909, 7
  %v911 = vsub.s32 0, %v910
  %v912 = vrot.slane %v907, %v911
  %vm914 = vcmask 130048
  %v916 = vsel %vm914, %v904, 0
  %918 = vmatprep.subr.mxu0 0.0
  %919 = vmatpush1.msra.mxu0 %v905
  %920 = vmatprep.subr.mxu0 0.0
  %921 = vmatpush1.msra.mxu0 %v906
  %922 = vmatprep.subr.mxu0 0.0
  %923 = vmatpush1.msra.mxu0 0.0
  %924 = vmatprep.subr.mxu0 0.0
  %925 = vmatpush1.msra.mxu0 0.0
  %926 = vmatprep.subr.mxu0 0.0
  %927 = vmatpush1.msra.mxu0 0.0
  %928 = vmatprep.subr.mxu0 0.0
  %929 = vmatpush1.msra.mxu0 0.0
  %930 = vmatprep.subr.mxu0 0.0
  %931 = vmatpush1.msra.mxu0 0.0
  %932 = vmatprep.subr.mxu0 0.0
  %933 = vmatpush1.msra.mxu0 0.0
  %934 = vmatprep.subr.mxu0 0.0
  %935 = vmatpush1.msra.mxu0 0.0
  %936 = vmatprep.subr.mxu0 0.0
  %937 = vmatpush1.msra.mxu0 0.0
  %938 = vmatprep.subr.mxu0 0.0
  %939 = vmatpush1.msra.mxu0 0.0
  %940 = vmatprep.subr.mxu0 0.0
  %941 = vmatpush1.msra.mxu0 0.0
  %942 = vmatprep.subr.mxu0 0.0
  %943 = vmatpush1.msra.mxu0 0.0
  %944 = vmatprep.subr.mxu0 0.0
  %945 = vmatpush1.msra.mxu0 0.0
  %946 = vmatprep.subr.mxu0 0.0
  %947 = vmatpush1.msra.mxu0 0.0
  %948 = vmatprep.subr.mxu0 0.0
  %949 = vmatpush1.msra.mxu0 0.0
  %950 = vmatprep.subr.mxu0 0.0
  %951 = vmatpush1.msra.mxu0 0.0
  %952 = vmatprep.subr.mxu0 0.0
  %953 = vmatpush1.msra.mxu0 0.0
  %954 = vmatprep.subr.mxu0 0.0
  %955 = vmatpush1.msra.mxu0 0.0
  %956 = vmatprep.subr.mxu0 0.0
  %957 = vmatpush1.msra.mxu0 0.0
  %958 = vmatprep.subr.mxu0 0.0
  %959 = vmatpush1.msra.mxu0 0.0
  %960 = vmatprep.subr.mxu0 0.0
  %961 = vmatpush1.msra.mxu0 0.0
  %962 = vmatprep.subr.mxu0 0.0
  %963 = vmatpush1.msra.mxu0 0.0
  %964 = vmatprep.subr.mxu0 0.0
  %965 = vmatpush1.msra.mxu0 0.0
  %966 = vmatprep.subr.mxu0 0.0
  %967 = vmatpush1.msra.mxu0 0.0
  %968 = vmatprep.subr.mxu0 0.0
  %969 = vmatpush1.msra.mxu0 0.0
  %970 = vmatprep.subr.mxu0 0.0
  %971 = vmatpush1.msra.mxu0 0.0
  %972 = vmatprep.subr.mxu0 0.0
  %973 = vmatpush1.msra.mxu0 0.0
  %974 = vmatprep.subr.mxu0 0.0
  %975 = vmatpush1.msra.mxu0 0.0
  %976 = vmatprep.subr.mxu0 0.0
  %977 = vmatpush1.msra.mxu0 0.0
  %978 = vmatprep.subr.mxu0 0.0
  %979 = vmatpush1.msra.mxu0 0.0
  %980 = vmatprep.subr.mxu0 0.0
  %981 = vmatpush1.msra.mxu0 0.0
  %982 = vmatprep.mubr.f32.mxu0 0.0
  %983 = vmatmul.mubr.f32.gmra.mrb[0].mxu0 %v916
  %v984 = vpop.f32.mrb[0].mxu0
  %v985 = vadd.f32 %v912, %v984
  %v986 = vpop.f32.mrb[0].mxu0
  %987 = vdwg.mxu0
  %vm988 = vcmask 15360
  %989 = vst.msk [vmem:[%s7] sm:$0xff] %vm988, %v985
  // Predicated region
  $region30: #{net_forward.1} parent=0 // pred_check
    _
  $region31: #{net_forward.1} parent=0 // pred_check_branch
    %991 = sbr.rel (0) target = $region33
  $region32: #{net_forward.1} parent=0 // pred_region
    _
  $region33: #{net_forward.1} parent=0 // pred_fallthru
    _
  // Predicated region
  $region34: #{net_forward.1} parent=0 // pred_check
    _
  $region35: #{net_forward.1} parent=0 // pred_check_branch
    %993 = sbr.rel (0) target = $region37
  $region36: #{net_forward.1} parent=0 // pred_region
    _
  $region37: #{net_forward.1} parent=0 // pred_fallthru
    _

</llo_original>
